<compile_context>
chip_gen: v7x
topology: tpu7x:2x2x1
jax: 0.10.0
libtpu: 0.0.40
codegen_flags: <defaults>
</compile_context>

<pallas_src>
import jax
import jax.numpy as jnp
from jax.experimental import pallas as pl
from jax.experimental.pallas import tpu as pltpu


def att_kernel(x_ref, mask_ref,
               wqkv_ref, bqkv_ref, wo_ref, bo_ref,
               out_ref):
    # Shapes: x_ref (TB*N, Din), mask_ref (TB, N, N) int8,
    #         wqkv (Din, 3H), bqkv (1, 3H), wo (H, Dout), bo (1, Dout),
    #         out_ref (TB*N, Dout).
    TB, N, _ = mask_ref.shape
    H = wo_ref.shape[0]

    x = x_ref[...]                                            # (TB*N, Din)

    # Fused V/Q/K projection: one MXU matmul instead of three, then ReLU.
    qkv = jnp.maximum(
        jnp.dot(x, wqkv_ref[...], preferred_element_type=jnp.float32)
        + bqkv_ref[...], 0.0)                                 # (TB*N, 3H)
    qkv3 = qkv.reshape(TB, N, 3 * H)                          # split batch back out
    v = qkv3[:, :, 0 * H:1 * H]                               # (TB, N, H)
    q = qkv3[:, :, 1 * H:2 * H]
    k = qkv3[:, :, 2 * H:3 * H]

    # Scores q @ k^T without materializing a transpose (contract on last dims).
    scores = jnp.einsum("bqh,bkh->bqk", q, k,
                        preferred_element_type=jnp.float32)   # (TB, N, N)

    # Masked softmax: select instead of scores*m - 9e15*(1-m) arithmetic.
    m = mask_ref[...].astype(jnp.float32)                     # 0./1.
    neg = jnp.float32(-9000000000000000.0)
    logits = jnp.where(m > 0.0, scores, neg)
    logits = logits - jnp.max(logits, axis=-1, keepdims=True)
    e = jnp.exp(logits)
    att = e * pl.reciprocal(jnp.sum(e, axis=-1, keepdims=True), approx=True)

    # Weighted sum of values, then output projection + ReLU.
    o = jnp.einsum("bqk,bkh->bqh", att, v,
                   preferred_element_type=jnp.float32)        # (TB, N, H)
    o2 = o.reshape(TB * N, H)
    out = jnp.maximum(
        jnp.dot(o2, wo_ref[...], preferred_element_type=jnp.float32)
        + bo_ref[...], 0.0)                                   # (TB*N, Dout)
    out_ref[...] = out.astype(out_ref.dtype)


def _pick_tb(batch, n_node):
    """Batch elements per grid step: aim for >=128 matmul rows (TB*N) while
    keeping >=2 grid steps so both TensorCores get work on dual-core chips."""
    best = 1
    for tb in range(1, batch + 1):
        if batch % tb:
            continue
        if batch // tb < 2 and batch > 1:
            continue
        best = tb
        if tb * n_node >= 128:
            break
    return best


def att_model_forward(x, mask, params, *, tb=None):
    """x: (B, N, Din) f32; mask: (B, N, N) of 0/1 (any numeric dtype)."""
    B, N, Din = x.shape
    H = params["wv"].shape[1]
    Dout = params["wo"].shape[1]

    if N % 8 != 0:
        # TODO(synk): support n_node not a multiple of 8 (sublane tile) — the
        # in-kernel (TB*N, .) <-> (TB, N, .) reshapes assume N % 8 == 0.
        raise NotImplementedError("n_node must be a multiple of 8")

    if tb is None:
        tb = _pick_tb(B, N)
    assert B % tb == 0
    grid_b = B // tb

    # Fuse V/Q/K weights and biases (negligible wrapper-side concat).
    wqkv = jnp.concatenate([params["wv"], params["wq"], params["wk"]], axis=1)
    bqkv = jnp.concatenate([params["bv"], params["bq"], params["bk"]], axis=1)
    wo, bo = params["wo"], params["bo"]

    x2 = x.reshape(B * N, Din)                     # row-major flatten, free in XLA
    mask_i8 = (mask != 0).astype(jnp.int8)         # 4x fewer mask DMA bytes

    const2d = lambda shape: pl.BlockSpec(shape, lambda b: (0, 0))

    flops = int(B * (2 * N * Din * 3 * H        # fused qkv projection
                     + 2 * N * N * H            # q @ k^T
                     + 2 * N * N * H            # att @ v
                     + 2 * N * H * Dout))       # output projection
    bytes_accessed = int(x2.size * 4 + mask_i8.size
                         + (wqkv.size + bqkv.size + wo.size + bo.size) * 4
                         + B * N * Dout * 4)
    cost = pl.CostEstimate(flops=flops,
                           transcendentals=int(B * N * N),
                           bytes_accessed=bytes_accessed)

    out = pl.pallas_call(
        att_kernel,
        out_shape=jax.ShapeDtypeStruct((B * N, Dout), jnp.float32),
        grid_spec=pltpu.PrefetchScalarGridSpec(
            num_scalar_prefetch=0,
            grid=(grid_b,),
            in_specs=[
                pl.BlockSpec((tb * N, Din), lambda b: (b, 0)),    # x (flat rows)
                pl.BlockSpec((tb, N, N),    lambda b: (b, 0, 0)), # mask (int8)
                const2d((Din, 3 * H)), const2d((1, 3 * H)),       # wqkv, bqkv
                const2d((H, Dout)),    const2d((1, Dout)),        # wo, bo
            ],
            out_specs=pl.BlockSpec((tb * N, Dout), lambda b: (b, 0)),
        ),
        compiler_params=pltpu.CompilerParams(
            dimension_semantics=("parallel",)),
        cost_estimate=cost,
    )(x2, mask_i8, wqkv, bqkv, wo, bo)

    return out.reshape(B, N, Dout)


def init_params(key, din, hidden, dout):
    ks = jax.random.split(key, 8)
    def lin(kw, kb, fan_in, fan_out):
        bound = 1.0 / jnp.sqrt(fan_in)
        w = jax.random.uniform(kw, (fan_in, fan_out), jnp.float32, -bound, bound)
        b = jax.random.uniform(kb, (1, fan_out), jnp.float32, -bound, bound)
        return w, b
    wv, bv = lin(ks[0], ks[1], din, hidden)
    wk, bk = lin(ks[2], ks[3], din, hidden)
    wq, bq = lin(ks[4], ks[5], din, hidden)
    wo, bo = lin(ks[6], ks[7], hidden, dout)
    return dict(wv=wv, bv=bv, wk=wk, bk=bk, wq=wq, bq=bq, wo=wo, bo=bo)


def reference_forward(x, mask, p):
    relu = lambda t: jnp.maximum(t, 0.0)
    v = relu(jnp.einsum("bnd,dh->bnh", x, p["wv"]) + p["bv"][0])
    q = relu(jnp.einsum("bnd,dh->bnh", x, p["wq"]) + p["bq"][0])
    k = relu(jnp.einsum("bnd,dh->bnh", x, p["wk"]) + p["bk"][0])
    scores = jnp.einsum("bqh,bkh->bqk", q, k)
    logits = scores * mask - 9000000000000000.0 * (1.0 - mask)
    att = jax.nn.softmax(logits, axis=2)
    out = jnp.einsum("bqk,bkh->bqh", att, v)
    return relu(jnp.einsum("bnh,hd->bnd", out, p["wo"]) + p["bo"][0])


if __name__ == "__main__":
    B, N, DIN, HIDDEN, DOUT = 8, 16, 32, 32, 32
    key = jax.random.PRNGKey(0)
    kx, km, kp = jax.random.split(key, 3)

    x = jax.random.normal(kx, (B, N, DIN), jnp.float32)
    # 0/1 adjacency-style mask with self-connections always present.
    mask = (jax.random.uniform(km, (B, N, N)) > 0.5).astype(jnp.float32)
    eye = jnp.eye(N, dtype=jnp.float32)[None]
    mask = jnp.maximum(mask, eye)

    params = init_params(kp, DIN, HIDDEN, DOUT)

    out = att_model_forward(x, mask, params)
    out = jax.block_until_ready(out)

    ref = reference_forward(x, mask, params)
    assert out.shape == (B, N, DOUT)
    # Tolerance accounts for the approx (EUP) reciprocal in the softmax.
    assert jnp.allclose(out, ref, atol=2e-3, rtol=2e-3), \
        float(jnp.max(jnp.abs(out - ref)))

    print("KERNEL_OK")
</pallas_src>

<mosaic_0001>
module attributes {stable_mosaic.version = 11 : i64} {
  func.func @att_kernel(%arg0: i32, %arg1: memref<64x32xf32, #tpu.memory_space<vmem>>, %arg2: memref<4x16x16xi8, #tpu.memory_space<vmem>>, %arg3: memref<32x96xf32, #tpu.memory_space<vmem>>, %arg4: memref<1x96xf32, #tpu.memory_space<vmem>>, %arg5: memref<32x32xf32, #tpu.memory_space<vmem>>, %arg6: memref<1x32xf32, #tpu.memory_space<vmem>>, %arg7: memref<64x32xf32, #tpu.memory_space<vmem>>) attributes {dimension_semantics = [#tpu.dimension_semantics<parallel>], iteration_bounds = array<i64: 2>, scalar_prefetch = 0 : i64, scratch_operands = 0 : i64, tpu.core_type = #tpu.core_type<tc>, window_params = [{transform_indices = @transform_0, window_bounds = array<i64: 64, 32>}, {transform_indices = @transform_1, window_bounds = array<i64: 4, 16, 16>}, {pipeline_mode = #tpu.pipeline_mode<synchronous>, transform_indices = @transform_2, window_bounds = array<i64: 32, 96>}, {pipeline_mode = #tpu.pipeline_mode<synchronous>, transform_indices = @transform_3, window_bounds = array<i64: 1, 96>}, {pipeline_mode = #tpu.pipeline_mode<synchronous>, transform_indices = @transform_4, window_bounds = array<i64: 32, 32>}, {pipeline_mode = #tpu.pipeline_mode<synchronous>, transform_indices = @transform_5, window_bounds = array<i64: 1, 32>}, {transform_indices = @transform_6, window_bounds = array<i64: 64, 32>}]} {
    %c0 = arith.constant 0 : index
    %c0_0 = arith.constant 0 : index
    %0 = vector.load %arg1[%c0, %c0_0] : memref<64x32xf32, #tpu.memory_space<vmem>>, vector<64x32xf32>
    %c0_1 = arith.constant 0 : index
    %c0_2 = arith.constant 0 : index
    %1 = vector.load %arg3[%c0_1, %c0_2] : memref<32x96xf32, #tpu.memory_space<vmem>>, vector<32x96xf32>
    %cst = arith.constant dense<0.000000e+00> : vector<64x96xf32>
    %2 = tpu.matmul %0, %1, %cst {dimension_numbers = #tpu.dot_dimension_numbers<[1], [0], [0], [1], [0, 0, 1, 1], [], []>} : vector<64x32xf32>, vector<32x96xf32>, vector<64x96xf32> -> vector<64x96xf32>
    %c0_3 = arith.constant 0 : index
    %c0_4 = arith.constant 0 : index
    %3 = vector.load %arg4[%c0_3, %c0_4] : memref<1x96xf32, #tpu.memory_space<vmem>>, vector<1x96xf32>
    %4 = vector.broadcast %3 : vector<1x96xf32> to vector<64x96xf32>
    %5 = arith.addf %2, %4 : vector<64x96xf32>
    %cst_5 = arith.constant 0.000000e+00 : f32
    %6 = vector.broadcast %cst_5 : f32 to vector<64x96xf32>
    %7 = arith.maximumf %5, %6 : vector<64x96xf32>
    %8 = vector.shape_cast %7 : vector<64x96xf32> to vector<4x16x96xf32>
    %9 = vector.extract_strided_slice %8 {offsets = [0, 0, 0], sizes = [4, 16, 32], strides = [1, 1, 1]} : vector<4x16x96xf32> to vector<4x16x32xf32>
    %10 = vector.extract_strided_slice %8 {offsets = [0, 0, 32], sizes = [4, 16, 32], strides = [1, 1, 1]} : vector<4x16x96xf32> to vector<4x16x32xf32>
    %11 = vector.extract_strided_slice %8 {offsets = [0, 0, 64], sizes = [4, 16, 32], strides = [1, 1, 1]} : vector<4x16x96xf32> to vector<4x16x32xf32>
    "tpu.trace_start"() <{level = 10 : i32, message = "bqh,bkh->bqk"}> : () -> ()
    %cst_6 = arith.constant dense<0.000000e+00> : vector<4x16x16xf32>
    %12 = tpu.matmul %10, %11, %cst_6 {dimension_numbers = #tpu.dot_dimension_numbers<[2], [2], [1], [1], [0, 0, 0, 1, 1, 1], [0], [0]>} : vector<4x16x32xf32>, vector<4x16x32xf32>, vector<4x16x16xf32> -> vector<4x16x16xf32>
    "tpu.trace_stop"() : () -> ()
    %c0_7 = arith.constant 0 : index
    %c0_8 = arith.constant 0 : index
    %c0_9 = arith.constant 0 : index
    %13 = vector.load %arg2[%c0_7, %c0_8, %c0_9] : memref<4x16x16xi8, #tpu.memory_space<vmem>>, vector<4x16x16xi8>
    %14 = arith.sitofp %13 : vector<4x16x16xi8> to vector<4x16x16xf32>
    %cst_10 = arith.constant 0.000000e+00 : f32
    %15 = vector.broadcast %cst_10 : f32 to vector<4x16x16xf32>
    %16 = arith.cmpf ogt, %14, %15 : vector<4x16x16xf32>
    %cst_11 = arith.constant -9.000000e+15 : f32
    %17 = vector.broadcast %cst_11 : f32 to vector<4x16x16xf32>
    %18 = arith.select %16, %12, %17 : vector<4x16x16xi1>, vector<4x16x16xf32>
    %cst_12 = arith.constant dense<0xFF800000> : vector<4x16xf32>
    %19 = vector.multi_reduction <maximumf>, %18, %cst_12 [2] : vector<4x16x16xf32> to vector<4x16xf32>
    %20 = vector.shape_cast %19 : vector<4x16xf32> to vector<4x16x1xf32>
    %21 = vector.broadcast %20 : vector<4x16x1xf32> to vector<4x16x16xf32>
    %22 = arith.subf %18, %21 : vector<4x16x16xf32>
    %23 = math.exp %22 : vector<4x16x16xf32>
    %cst_13 = arith.constant dense<0.000000e+00> : vector<4x16xf32>
    %24 = vector.multi_reduction <add>, %23, %cst_13 [2] : vector<4x16x16xf32> to vector<4x16xf32>
    %25 = vector.shape_cast %24 : vector<4x16xf32> to vector<4x16x1xf32>
    %26 = tpu.reciprocal %25 {approx = true} : vector<4x16x1xf32> -> vector<4x16x1xf32>
    %27 = vector.broadcast %26 : vector<4x16x1xf32> to vector<4x16x16xf32>
    %28 = arith.mulf %23, %27 : vector<4x16x16xf32>
    "tpu.trace_start"() <{level = 10 : i32, message = "bqk,bkh->bqh"}> : () -> ()
    %cst_14 = arith.constant dense<0.000000e+00> : vector<4x16x32xf32>
    %29 = tpu.matmul %28, %9, %cst_14 {dimension_numbers = #tpu.dot_dimension_numbers<[2], [1], [1], [2], [0, 0, 0, 1, 1, 2], [0], [0]>} : vector<4x16x16xf32>, vector<4x16x32xf32>, vector<4x16x32xf32> -> vector<4x16x32xf32>
    "tpu.trace_stop"() : () -> ()
    %30 = vector.shape_cast %29 : vector<4x16x32xf32> to vector<64x32xf32>
    %c0_15 = arith.constant 0 : index
    %c0_16 = arith.constant 0 : index
    %31 = vector.load %arg5[%c0_15, %c0_16] : memref<32x32xf32, #tpu.memory_space<vmem>>, vector<32x32xf32>
    %cst_17 = arith.constant dense<0.000000e+00> : vector<64x32xf32>
    %32 = tpu.matmul %30, %31, %cst_17 {dimension_numbers = #tpu.dot_dimension_numbers<[1], [0], [0], [1], [0, 0, 1, 1], [], []>} : vector<64x32xf32>, vector<32x32xf32>, vector<64x32xf32> -> vector<64x32xf32>
    %c0_18 = arith.constant 0 : index
    %c0_19 = arith.constant 0 : index
    %33 = vector.load %arg6[%c0_18, %c0_19] : memref<1x32xf32, #tpu.memory_space<vmem>>, vector<1x32xf32>
    %34 = vector.broadcast %33 : vector<1x32xf32> to vector<64x32xf32>
    %35 = arith.addf %32, %34 : vector<64x32xf32>
    %cst_20 = arith.constant 0.000000e+00 : f32
    %36 = vector.broadcast %cst_20 : f32 to vector<64x32xf32>
    %37 = arith.maximumf %35, %36 : vector<64x32xf32>
    %c0_21 = arith.constant 0 : index
    %c0_22 = arith.constant 0 : index
    %38 = vector.load %arg7[%c0_21, %c0_22] : memref<64x32xf32, #tpu.memory_space<vmem>>, vector<64x32xf32>
    tpu.vector_store %arg7[%c0_21, %c0_22], %37 {strides = array<i32>} : memref<64x32xf32, #tpu.memory_space<vmem>>, vector<64x32xf32>,
    return
  }
  func.func @transform_0(%arg0: i32) -> (i32, i32) {
    %c0_i32 = arith.constant 0 : i32
    %c0_i32_0 = arith.constant 0 : i32
    return %arg0, %c0_i32 : i32, i32
  }
  func.func @transform_1(%arg0: i32) -> (i32, i32, i32) {
    %c0_i32 = arith.constant 0 : i32
    %c0_i32_0 = arith.constant 0 : i32
    %c0_i32_1 = arith.constant 0 : i32
    return %arg0, %c0_i32, %c0_i32_0 : i32, i32, i32
  }
  func.func @transform_2(%arg0: i32) -> (i32, i32) {
    %c0_i32 = arith.constant 0 : i32
    %c0_i32_0 = arith.constant 0 : i32
    %c0_i32_1 = arith.constant 0 : i32
    return %c0_i32, %c0_i32_0 : i32, i32
  }
  func.func @transform_3(%arg0: i32) -> (i32, i32) {
    %c0_i32 = arith.constant 0 : i32
    %c0_i32_0 = arith.constant 0 : i32
    %c0_i32_1 = arith.constant 0 : i32
    return %c0_i32, %c0_i32_0 : i32, i32
  }
  func.func @transform_4(%arg0: i32) -> (i32, i32) {
    %c0_i32 = arith.constant 0 : i32
    %c0_i32_0 = arith.constant 0 : i32
    %c0_i32_1 = arith.constant 0 : i32
    return %c0_i32, %c0_i32_0 : i32, i32
  }
  func.func @transform_5(%arg0: i32) -> (i32, i32) {
    %c0_i32 = arith.constant 0 : i32
    %c0_i32_0 = arith.constant 0 : i32
    %c0_i32_1 = arith.constant 0 : i32
    return %c0_i32, %c0_i32_0 : i32, i32
  }
  func.func @transform_6(%arg0: i32) -> (i32, i32) {
    %c0_i32 = arith.constant 0 : i32
    %c0_i32_0 = arith.constant 0 : i32
    return %arg0, %c0_i32 : i32, i32
  }
}

</mosaic_0001>

<llo_original>
// kernel: tpu_custom_call.1
$region0: #{tpu_custom_call.1}
  #allocation0 [shape = 'u32[]', space=smem, size = 0x4, offset = 0x4, fixed_abs, tag = 'smem constant byte address 0x4 - core index']
  #allocation1 [shape = 'u32[144,128]{1,0:T(1,128)}', space=vmem, size = 0x12000, scoped, tag = 'internal scratch']
  %s0 = inlined_call_operand.vmem [shape: f32[128,32], index: 0, kind: input, shape index: {}]
  %s1 = inlined_call_operand.vmem [shape: s8[8,16,16], index: 1, kind: input, shape index: {}]
  %s2 = inlined_call_operand.vmem [shape: f32[32,96], index: 2, kind: input, shape index: {}]
  %s3 = inlined_call_operand.vmem [shape: f32[1,96], index: 3, kind: input, shape index: {}]
  %s4 = inlined_call_operand.vmem [shape: f32[32,32], index: 4, kind: input, shape index: {}]
  %s5 = inlined_call_operand.vmem [shape: f32[1,32], index: 5, kind: input, shape index: {}]
  %s6 = inlined_call_operand.vmem [shape: f32[128,32], index: 6, kind: output, shape index: {}]
  %s7 = sld [smem:[#allocation0]]
  $region57: #{tpu_custom_call.1} parent=0
    _
  %s9 = ssub.s32 1, %s7
  %s10 = scalar_select 0, %s9, %s7
  loop: start=0, step=1, limit=4
  $region2: #{tpu_custom_call.1} parent=0 // loop_pre_header
    _
  $region3: #{tpu_custom_call.1} parent=0 // loop_header
    %s12 = sphi 0, %s16
    %p13 = scmp.ge.s32.totalorder %s12, 4
    %s22 = sphi 0, %s24
    %s25 = sphi 0, %s22
    %s26 = sphi 0, %s25
    %s42 = sphi 0, %s26
    %s48 = sphi 0, %s50
    %s51 = sphi 0, %s48
    %s52 = sphi 0, %s51
    %s68 = sphi 0, %s52
    %s72 = sphi 0, %s72
    %s74 = sphi 0, %s72
    %s75 = sphi 0, %s74
    %s89 = sphi 0, %s75
    %s93 = sphi 0, %s93
    %s95 = sphi 0, %s93
    %s96 = sphi 0, %s95
    %s110 = sphi 0, %s96
    %s114 = sphi 0, %s114
    %s116 = sphi 0, %s114
    %s117 = sphi 0, %s116
    %s131 = sphi 0, %s117
    %s135 = sphi 0, %s135
    %s137 = sphi 0, %s135
    %s138 = sphi 0, %s137
    %s152 = sphi 0, %s138
    %s158 = sphi 0, %s160
    %s161 = sphi 0, %s158
    %s162 = sphi 0, %s161
    %s178 = sphi 0, %s162
  $region4: #{tpu_custom_call.1} parent=0 // loop_header_branch
    %15 = sbr.rel (%p13) target = $region8
  $region5: #{tpu_custom_call.1} parent=0 // loop_body
    %s17 = ssub.s32 %s12, 1
    %s18 = ssub.s32 %s12, 2
    %s19 = sadd.s32 %s12, 1
    %s20 = ssub.s32 %s12, %s19
    %p21 = scmp.eq.s32.totalorder %s20, 0
    %s23 = sadd.s32 %s22, 1
    %s24 = scalar_select %p21, %s22, %s23
    %p27 = pneg %p21
    %p28 = scmp.eq.s32.totalorder %s12, 1
    %p29 = por %p27, %p28
    %p30 = scmp.ne.s32.totalorder %s22, %s25
    %p31 = scmp.eq.s32.totalorder %s12, 0
    %p32 = por %p30, %p31
    %p33 = scmp.ne.s32.totalorder %s22, %s25
    %p34 = scmp.eq.s32.totalorder %s17, 1
    %p35 = por %p33, %p34
    %p36 = scmp.ne.s32.totalorder %s25, %s26
    %p37 = scmp.eq.s32.totalorder %s17, 0
    %p38 = por %p36, %p37
    %p39 = scmp.ne.s32.totalorder %s25, %s26
    %p40 = scmp.eq.s32.totalorder %s18, 1
    %p41 = por %p39, %p40
    %p43 = scmp.ne.s32.totalorder %s26, %s42
    %p44 = scmp.eq.s32.totalorder %s18, 0
    %p45 = por %p43, %p44
    %s46 = ssub.s32 %s12, %s19
    %p47 = scmp.eq.s32.totalorder %s46, 0
    %s49 = sadd.s32 %s48, 1
    %s50 = scalar_select %p47, %s48, %s49
    %p53 = pneg %p47
    %p54 = scmp.eq.s32.totalorder %s12, 1
    %p55 = por %p53, %p54
    %p56 = scmp.ne.s32.totalorder %s48, %s51
    %p57 = scmp.eq.s32.totalorder %s12, 0
    %p58 = por %p56, %p57
    %p59 = scmp.ne.s32.totalorder %s48, %s51
    %p60 = scmp.eq.s32.totalorder %s17, 1
    %p61 = por %p59, %p60
    %p62 = scmp.ne.s32.totalorder %s51, %s52
    %p63 = scmp.eq.s32.totalorder %s17, 0
    %p64 = por %p62, %p63
    %p65 = scmp.ne.s32.totalorder %s51, %s52
    %p66 = scmp.eq.s32.totalorder %s18, 1
    %p67 = por %p65, %p66
    %p69 = scmp.ne.s32.totalorder %s52, %s68
    %p70 = scmp.eq.s32.totalorder %s18, 0
    %p71 = por %p69, %p70
    %s73 = sadd.s32 %s72, 1
    %p76 = scmp.eq.s32.totalorder %s12, 1
    %p77 = scmp.ne.s32.totalorder %s72, %s74
    %p78 = scmp.eq.s32.totalorder %s12, 0
    %p79 = por %p77, %p78
    %p80 = scmp.ne.s32.totalorder %s72, %s74
    %p81 = scmp.eq.s32.totalorder %s17, 1
    %p82 = por %p80, %p81
    %p83 = scmp.ne.s32.totalorder %s74, %s75
    %p84 = scmp.eq.s32.totalorder %s17, 0
    %p85 = por %p83, %p84
    %p86 = scmp.ne.s32.totalorder %s74, %s75
    %p87 = scmp.eq.s32.totalorder %s18, 1
    %p88 = por %p86, %p87
    %p90 = scmp.ne.s32.totalorder %s75, %s89
    %p91 = scmp.eq.s32.totalorder %s18, 0
    %p92 = por %p90, %p91
    %s94 = sadd.s32 %s93, 1
    %p97 = scmp.eq.s32.totalorder %s12, 1
    %p98 = scmp.ne.s32.totalorder %s93, %s95
    %p99 = scmp.eq.s32.totalorder %s12, 0
    %p100 = por %p98, %p99
    %p101 = scmp.ne.s32.totalorder %s93, %s95
    %p102 = scmp.eq.s32.totalorder %s17, 1
    %p103 = por %p101, %p102
    %p104 = scmp.ne.s32.totalorder %s95, %s96
    %p105 = scmp.eq.s32.totalorder %s17, 0
    %p106 = por %p104, %p105
    %p107 = scmp.ne.s32.totalorder %s95, %s96
    %p108 = scmp.eq.s32.totalorder %s18, 1
    %p109 = por %p107, %p108
    %p111 = scmp.ne.s32.totalorder %s96, %s110
    %p112 = scmp.eq.s32.totalorder %s18, 0
    %p113 = por %p111, %p112
    %s115 = sadd.s32 %s114, 1
    %p118 = scmp.eq.s32.totalorder %s12, 1
    %p119 = scmp.ne.s32.totalorder %s114, %s116
    %p120 = scmp.eq.s32.totalorder %s12, 0
    %p121 = por %p119, %p120
    %p122 = scmp.ne.s32.totalorder %s114, %s116
    %p123 = scmp.eq.s32.totalorder %s17, 1
    %p124 = por %p122, %p123
    %p125 = scmp.ne.s32.totalorder %s116, %s117
    %p126 = scmp.eq.s32.totalorder %s17, 0
    %p127 = por %p125, %p126
    %p128 = scmp.ne.s32.totalorder %s116, %s117
    %p129 = scmp.eq.s32.totalorder %s18, 1
    %p130 = por %p128, %p129
    %p132 = scmp.ne.s32.totalorder %s117, %s131
    %p133 = scmp.eq.s32.totalorder %s18, 0
    %p134 = por %p132, %p133
    %s136 = sadd.s32 %s135, 1
    %p139 = scmp.eq.s32.totalorder %s12, 1
    %p140 = scmp.ne.s32.totalorder %s135, %s137
    %p141 = scmp.eq.s32.totalorder %s12, 0
    %p142 = por %p140, %p141
    %p143 = scmp.ne.s32.totalorder %s135, %s137
    %p144 = scmp.eq.s32.totalorder %s17, 1
    %p145 = por %p143, %p144
    %p146 = scmp.ne.s32.totalorder %s137, %s138
    %p147 = scmp.eq.s32.totalorder %s17, 0
    %p148 = por %p146, %p147
    %p149 = scmp.ne.s32.totalorder %s137, %s138
    %p150 = scmp.eq.s32.totalorder %s18, 1
    %p151 = por %p149, %p150
    %p153 = scmp.ne.s32.totalorder %s138, %s152
    %p154 = scmp.eq.s32.totalorder %s18, 0
    %p155 = por %p153, %p154
    %s156 = ssub.s32 %s12, %s19
    %p157 = scmp.eq.s32.totalorder %s156, 0
    %s159 = sadd.s32 %s158, 1
    %s160 = scalar_select %p157, %s158, %s159
    %p163 = pneg %p157
    %p164 = scmp.eq.s32.totalorder %s12, 1
    %p165 = por %p163, %p164
    %p166 = scmp.ne.s32.totalorder %s158, %s161
    %p167 = scmp.eq.s32.totalorder %s12, 0
    %p168 = por %p166, %p167
    %p169 = scmp.ne.s32.totalorder %s158, %s161
    %p170 = scmp.eq.s32.totalorder %s17, 1
    %p171 = por %p169, %p170
    %p172 = scmp.ne.s32.totalorder %s161, %s162
    %p173 = scmp.eq.s32.totalorder %s17, 0
    %p174 = por %p172, %p173
    %p175 = scmp.ne.s32.totalorder %s161, %s162
    %p176 = scmp.eq.s32.totalorder %s18, 1
    %p177 = por %p175, %p176
    %p179 = scmp.ne.s32.totalorder %s162, %s178
    %p180 = scmp.eq.s32.totalorder %s18, 0
    %p181 = por %p179, %p180
    %p182 = scmp.le.s32.totalorder 1, %s12
    %p183 = scmp.lt.s32.totalorder %s12, 3
    %p184 = pnand %p182, %p183
    %p185 = pneg %p184
    // Predicated region
    $region9: #{tpu_custom_call.1} parent=5 // pred_check
      _
    $region10: #{tpu_custom_call.1} parent=5 // pred_check_branch
      %187 = sbr.rel (%p184) target = $region12
    $region11: #{tpu_custom_call.1} parent=5 // pred_region
      %s188 = ssub.s32 %s12, 1
      // Predicated region
      $region13: #{tpu_custom_call.1} parent=11 // pred_check
        %p189 = pneg %p85
      $region14: #{tpu_custom_call.1} parent=11 // pred_check_branch
        %191 = sbr.rel (%p189) target = $region16
      $region15: #{tpu_custom_call.1} parent=11 // pred_region
        _
      $region16: #{tpu_custom_call.1} parent=11 // pred_fallthru
        _
      // Predicated region
      $region17: #{tpu_custom_call.1} parent=11 // pred_check
        %p192 = pneg %p106
      $region18: #{tpu_custom_call.1} parent=11 // pred_check_branch
        %194 = sbr.rel (%p192) target = $region20
      $region19: #{tpu_custom_call.1} parent=11 // pred_region
        _
      $region20: #{tpu_custom_call.1} parent=11 // pred_fallthru
        _
      // Predicated region
      $region21: #{tpu_custom_call.1} parent=11 // pred_check
        %p195 = pneg %p127
      $region22: #{tpu_custom_call.1} parent=11 // pred_check_branch
        %197 = sbr.rel (%p195) target = $region24
      $region23: #{tpu_custom_call.1} parent=11 // pred_region
        _
      $region24: #{tpu_custom_call.1} parent=11 // pred_fallthru
        _
      // Predicated region
      $region25: #{tpu_custom_call.1} parent=11 // pred_check
        %p198 = pneg %p148
      $region26: #{tpu_custom_call.1} parent=11 // pred_check_branch
        %200 = sbr.rel (%p198) target = $region28
      $region27: #{tpu_custom_call.1} parent=11 // pred_region
        _
      $region28: #{tpu_custom_call.1} parent=11 // pred_fallthru
        _
    $region12: #{tpu_custom_call.1} parent=5 // pred_fallthru
      _
    %p201 = scmp.lt.s32.totalorder %s12, 2
    // Predicated region
    $region29: #{tpu_custom_call.1} parent=5 // pred_check
      %p202 = pneg %p201
    $region30: #{tpu_custom_call.1} parent=5 // pred_check_branch
      %204 = sbr.rel (%p202) target = $region32
    $region31: #{tpu_custom_call.1} parent=5 // pred_region
      // Predicated region
      $region33: #{tpu_custom_call.1} parent=31 // pred_check
        %p205 = pneg %p32
      $region34: #{tpu_custom_call.1} parent=31 // pred_check_branch
        %207 = sbr.rel (%p205) target = $region36
      $region35: #{tpu_custom_call.1} parent=31 // pred_region
        %s208 = smul.u32 8, %s12
        %p209 = scmp.lt.s32.totalorder %s208, 15
        %s210 = scalar_select %p209, %s208, 15
        %s211 = smul.addr %s210, 8
        %s212 = scalar_lea.vmem %s0, %s211
        %s213 = smul.u32 8, %s12
      $region36: #{tpu_custom_call.1} parent=31 // pred_fallthru
        _
      // Predicated region
      $region37: #{tpu_custom_call.1} parent=31 // pred_check
        %p214 = pneg %p58
      $region38: #{tpu_custom_call.1} parent=31 // pred_check_branch
        %216 = sbr.rel (%p214) target = $region40
      $region39: #{tpu_custom_call.1} parent=31 // pred_region
        %s217 = smul.u32 4, %s12
        %p218 = scmp.lt.s32.totalorder %s217, 7
        %s219 = scalar_select %p218, %s217, 7
        %s220 = smul.addr %s219, 2
        %s221 = smul.addr %s220, 2
        %s222 = scalar_lea.vmem %s1, %s221
        %s223 = smul.u32 4, %s12
      $region40: #{tpu_custom_call.1} parent=31 // pred_fallthru
        _
    $region32: #{tpu_custom_call.1} parent=5 // pred_fallthru
      _
    %p224 = scmp.le.s32.totalorder 1, %s12
    %p225 = scmp.lt.s32.totalorder %s12, 3
    %p226 = pnand %p224, %p225
    %p227 = pneg %p226
    // Predicated region
    $region41: #{tpu_custom_call.1} parent=5 // pred_check
      _
    $region42: #{tpu_custom_call.1} parent=5 // pred_check_branch
      %229 = sbr.rel (%p226) target = $region44
    $region43: #{tpu_custom_call.1} parent=5 // pred_region
      %s230 = ssub.s32 %s12, 1
      %s231 = smul.u32 8, %s17
      %p232 = scmp.lt.s32.totalorder %s231, 15
      %s233 = scalar_select %p232, %s231, 15
      %s234 = smul.addr %s233, 8
      %s235 = scalar_lea.vmem %s0, %s234
      %p236 = pneg %p38
      %p237 = pneg %p35
      %s238 = smul.u32 4, %s17
      %p239 = scmp.lt.s32.totalorder %s238, 7
      %s240 = scalar_select %p239, %s238, 7
      %s241 = smul.addr %s240, 2
      %s242 = smul.addr %s241, 2
      %s243 = scalar_lea.vmem %s1, %s242
      %p244 = pneg %p64
      %p245 = pneg %p61
      %p246 = pneg %p85
      %p247 = pneg %p82
      %p248 = pneg %p106
      %p249 = pneg %p103
      %p250 = pneg %p127
      %p251 = pneg %p124
      %p252 = pneg %p148
      %p253 = pneg %p145
      %p254 = pneg %p174
      %p255 = pneg %p171
      %s256 = smul.u32 8, %s17
      %p257 = scmp.lt.s32.totalorder %s256, 15
      %s258 = scalar_select %p257, %s256, 15
      %s259 = smul.addr %s258, 8
      %s260 = scalar_lea.vmem %s6, %s259
      %s261 = smul.u32 8, %s17
      %p262 = scmp.lt.s32.totalorder %s261, 15
      %s263 = scalar_select %p262, %s261, 15
      %s264 = smul.addr %s263, 8
      %s265 = scalar_lea.vmem %s0, %s264
      %s266 = smul.u32 8, %s17
      %s267 = smul.u32 4, %s17
      %p268 = scmp.lt.s32.totalorder %s267, 7
      %s269 = scalar_select %p268, %s267, 7
      %s270 = smul.addr %s269, 2
      %s271 = smul.addr %s270, 2
      %s272 = scalar_lea.vmem %s1, %s271
      %s273 = smul.u32 4, %s17
      %s274 = smul.u32 8, %s17
      %p275 = scmp.lt.s32.totalorder %s274, 15
      %s276 = scalar_select %p275, %s274, 15
      %s277 = smul.addr %s276, 8
      %s278 = scalar_lea.vmem %s6, %s277
      %s279 = smul.u32 8, %s17
      %v280 = vld [vmem:[%s265] sm:$0xff]
      %v281 = vld [vmem:[%s265 + $0x8] sm:$0xff]
      %v282 = vld [vmem:[%s265 + $0x10] sm:$0xff]
      %v283 = vld [vmem:[%s265 + $0x18] sm:$0xff]
      %v284 = vld [vmem:[%s265 + $0x20] sm:$0xff]
      %v285 = vld [vmem:[%s265 + $0x28] sm:$0xff]
      %v286 = vld [vmem:[%s265 + $0x30] sm:$0xff]
      %v287 = vld [vmem:[%s265 + $0x38] sm:$0xff]
      %v288 = vld [vmem:[%s2] sm:$0xff]
      %v289 = vld [vmem:[%s2 + $0x8] sm:$0xff]
      %v290 = vld [vmem:[%s2 + $0x10] sm:$0xff]
      %v291 = vld [vmem:[%s2 + $0x18] sm:$0xff]
      %v292 = vld [vmem:[%s3] sm:$0x1]
      %v294 = vlaneseq
      %v295 = vshrl.u32 %v294, 7
      %v296 = vsub.s32 0, %v295
      %v297 = vrot.slane %v292, %v296
      %vm299 = vcmask 261120
      %v301 = vsel %vm299, %v280, 0
      %v304 = vsel %vm299, %v281, 0
      %v307 = vsel %vm299, %v282, 0
      %v310 = vsel %vm299, %v283, 0
      %v313 = vsel %vm299, %v284, 0
      %v316 = vsel %vm299, %v285, 0
      %v319 = vsel %vm299, %v286, 0
      %v322 = vsel %vm299, %v287, 0
      %324 = vmatprep.subr.mxu0 0.0
      %325 = vmatpush1.msra.mxu0 %v288
      %326 = vmatprep.subr.mxu0 0.0
      %327 = vmatpush1.msra.mxu0 %v289
      %328 = vmatprep.subr.mxu0 0.0
      %329 = vmatpush1.msra.mxu0 %v290
      %330 = vmatprep.subr.mxu0 0.0
      %331 = vmatpush1.msra.mxu0 %v291
      %332 = vmatprep.subr.mxu0 0.0
      %333 = vmatpush1.msra.mxu0 0.0
      %334 = vmatprep.subr.mxu0 0.0
      %335 = vmatpush1.msra.mxu0 0.0
      %336 = vmatprep.subr.mxu0 0.0
      %337 = vmatpush1.msra.mxu0 0.0
      %338 = vmatprep.subr.mxu0 0.0
      %339 = vmatpush1.msra.mxu0 0.0
      %340 = vmatprep.subr.mxu0 0.0
      %341 = vmatpush1.msra.mxu0 0.0
      %342 = vmatprep.subr.mxu0 0.0
      %343 = vmatpush1.msra.mxu0 0.0
      %344 = vmatprep.subr.mxu0 0.0
      %345 = vmatpush1.msra.mxu0 0.0
      %346 = vmatprep.subr.mxu0 0.0
      %347 = vmatpush1.msra.mxu0 0.0
      %348 = vmatprep.subr.mxu0 0.0
      %349 = vmatpush1.msra.mxu0 0.0
      %350 = vmatprep.subr.mxu0 0.0
      %351 = vmatpush1.msra.mxu0 0.0
      %352 = vmatprep.subr.mxu0 0.0
      %353 = vmatpush1.msra.mxu0 0.0
      %354 = vmatprep.subr.mxu0 0.0
      %355 = vmatpush1.msra.mxu0 0.0
      %356 = vmatprep.subr.mxu0 0.0
      %357 = vmatpush1.msra.mxu0 0.0
      %358 = vmatprep.subr.mxu0 0.0
      %359 = vmatpush1.msra.mxu0 0.0
      %360 = vmatprep.subr.mxu0 0.0
      %361 = vmatpush1.msra.mxu0 0.0
      %362 = vmatprep.subr.mxu0 0.0
      %363 = vmatpush1.msra.mxu0 0.0
      %364 = vmatprep.subr.mxu0 0.0
      %365 = vmatpush1.msra.mxu0 0.0
      %366 = vmatprep.subr.mxu0 0.0
      %367 = vmatpush1.msra.mxu0 0.0
      %368 = vmatprep.subr.mxu0 0.0
      %369 = vmatpush1.msra.mxu0 0.0
      %370 = vmatprep.subr.mxu0 0.0
      %371 = vmatpush1.msra.mxu0 0.0
      %372 = vmatprep.subr.mxu0 0.0
      %373 = vmatpush1.msra.mxu0 0.0
      %374 = vmatprep.subr.mxu0 0.0
      %375 = vmatpush1.msra.mxu0 0.0
      %376 = vmatprep.subr.mxu0 0.0
      %377 = vmatpush1.msra.mxu0 0.0
      %378 = vmatprep.subr.mxu0 0.0
      %379 = vmatpush1.msra.mxu0 0.0
      %380 = vmatprep.subr.mxu0 0.0
      %381 = vmatpush1.msra.mxu0 0.0
      %382 = vmatprep.subr.mxu0 0.0
      %383 = vmatpush1.msra.mxu0 0.0
      %384 = vmatprep.subr.mxu0 0.0
      %385 = vmatpush1.msra.mxu0 0.0
      %386 = vmatprep.subr.mxu0 0.0
      %387 = vmatpush1.msra.mxu0 0.0
      %388 = vmatprep.mubr.f32.mxu0 0.0
      %389 = vmatmul.mubr.f32.gmra.mrb[0].mxu0 %v301
      %v390 = vpop.f32.mrb[0].mxu0
      %v391 = vadd.f32 %v297, %v390
      %v392 = vpop.f32.mrb[0].mxu0
      %393 = vmatprep.mubr.f32.mxu0 0.0
      %394 = vmatmul.mubr.f32.gmra.mrb[0].mxu0 %v304
      %v395 = vpop.f32.mrb[0].mxu0
      %v396 = vadd.f32 %v297, %v395
      %v397 = vpop.f32.mrb[0].mxu0
      %398 = vmatprep.mubr.f32.mxu0 0.0
      %399 = vmatmul.mubr.f32.gmra.mrb[0].mxu0 %v307
      %v400 = vpop.f32.mrb[0].mxu0
      %v401 = vadd.f32 %v297, %v400
      %v402 = vpop.f32.mrb[0].mxu0
      %403 = vmatprep.mubr.f32.mxu0 0.0
      %404 = vmatmul.mubr.f32.gmra.mrb[0].mxu0 %v310
      %v405 = vpop.f32.mrb[0].mxu0
      %v406 = vadd.f32 %v297, %v405
      %v407 = vpop.f32.mrb[0].mxu0
      %408 = vmatprep.mubr.f32.mxu0 0.0
      %409 = vmatmul.mubr.f32.gmra.mrb[0].mxu0 %v313
      %v410 = vpop.f32.mrb[0].mxu0
      %v411 = vadd.f32 %v297, %v410
      %v412 = vpop.f32.mrb[0].mxu0
      %413 = vmatprep.mubr.f32.mxu0 0.0
      %414 = vmatmul.mubr.f32.gmra.mrb[0].mxu0 %v316
      %v415 = vpop.f32.mrb[0].mxu0
      %v416 = vadd.f32 %v297, %v415
      %v417 = vpop.f32.mrb[0].mxu0
      %418 = vmatprep.mubr.f32.mxu0 0.0
      %419 = vmatmul.mubr.f32.gmra.mrb[0].mxu0 %v319
      %v420 = vpop.f32.mrb[0].mxu0
      %v421 = vadd.f32 %v297, %v420
      %v422 = vpop.f32.mrb[0].mxu0
      %423 = vmatprep.mubr.f32.mxu0 0.0
      %424 = vmatmul.mubr.f32.gmra.mrb[0].mxu0 %v322
      %v425 = vpop.f32.mrb[0].mxu0
      %v426 = vadd.f32 %v297, %v425
      %v427 = vpop.f32.mrb[0].mxu0
      %428 = vdwg.mxu0
      %v429 = vmax.f32 %v391, 0.0
      %v430 = vmax.f32 %v396, 0.0
      %v431 = vmax.f32 %v401, 0.0
      %v432 = vmax.f32 %v406, 0.0
      %v433 = vmax.f32 %v411, 0.0
      %v434 = vmax.f32 %v416, 0.0
      %v435 = vmax.f32 %v421, 0.0
      %v436 = vmax.f32 %v426, 0.0
      %439 = vrot.lane.b32.xlu0 %v429, 96
      %v440 = vpop.permute.xlu0 %439
      %441 = vrot.lane.b32.xlu0 %v430, 96
      %v442 = vpop.permute.xlu0 %441
      %443 = vrot.lane.b32.xlu0 %v429, 64
      %v444 = vpop.permute.xlu0 %443
      %445 = vrot.lane.b32.xlu0 %v430, 64
      %v446 = vpop.permute.xlu0 %445
      %v447 = vsel %vm299, %v440, 0
      %v449 = vsel %vm299, %v442, 0
      %v451 = vsel %vm299, %v444, 0
      %v453 = vsel %vm299, %v446, 0
      %455 = vmatprep.subr.mxu0 0.0
      %456 = vmatpush1.xpose.msra.mxu0 %v451
      %457 = vmatprep.subr.mxu0 0.0
      %458 = vmatpush1.xpose.msra.mxu0 %v453
      %459 = vmatprep.subr.mxu0 0.0
      %460 = vmatpush1.xpose.msra.mxu0 0.0
      %461 = vmatprep.subr.mxu0 0.0
      %462 = vmatpush1.xpose.msra.mxu0 0.0
      %463 = vmatprep.subr.mxu0 0.0
      %464 = vmatpush1.xpose.msra.mxu0 0.0
      %465 = vmatprep.subr.mxu0 0.0
      %466 = vmatpush1.xpose.msra.mxu0 0.0
      %467 = vmatprep.subr.mxu0 0.0
      %468 = vmatpush1.xpose.msra.mxu0 0.0
      %469 = vmatprep.subr.mxu0 0.0
      %470 = vmatpush1.xpose.msra.mxu0 0.0
      %471 = vmatprep.subr.mxu0 0.0
      %472 = vmatpush1.xpose.msra.mxu0 0.0
      %473 = vmatprep.subr.mxu0 0.0
      %474 = vmatpush1.xpose.msra.mxu0 0.0
      %475 = vmatprep.subr.mxu0 0.0
      %476 = vmatpush1.xpose.msra.mxu0 0.0
      %477 = vmatprep.subr.mxu0 0.0
      %478 = vmatpush1.xpose.msra.mxu0 0.0
      %479 = vmatprep.subr.mxu0 0.0
      %480 = vmatpush1.xpose.msra.mxu0 0.0
      %481 = vmatprep.subr.mxu0 0.0
      %482 = vmatpush1.xpose.msra.mxu0 0.0
      %483 = vmatprep.subr.mxu0 0.0
      %484 = vmatpush1.xpose.msra.mxu0 0.0
      %485 = vmatprep.subr.mxu0 0.0
      %486 = vmatpush1.xpose.msra.mxu0 0.0
      %487 = vmatprep.subr.mxu0 0.0
      %488 = vmatpush1.xpose.msra.mxu0 0.0
      %489 = vmatprep.subr.mxu0 0.0
      %490 = vmatpush1.xpose.msra.mxu0 0.0
      %491 = vmatprep.subr.mxu0 0.0
      %492 = vmatpush1.xpose.msra.mxu0 0.0
      %493 = vmatprep.subr.mxu0 0.0
      %494 = vmatpush1.xpose.msra.mxu0 0.0
      %495 = vmatprep.subr.mxu0 0.0
      %496 = vmatpush1.xpose.msra.mxu0 0.0
      %497 = vmatprep.subr.mxu0 0.0
      %498 = vmatpush1.xpose.msra.mxu0 0.0
      %499 = vmatprep.subr.mxu0 0.0
      %500 = vmatpush1.xpose.msra.mxu0 0.0
      %501 = vmatprep.subr.mxu0 0.0
      %502 = vmatpush1.xpose.msra.mxu0 0.0
      %503 = vmatprep.subr.mxu0 0.0
      %504 = vmatpush1.xpose.msra.mxu0 0.0
      %505 = vmatprep.subr.mxu0 0.0
      %506 = vmatpush1.xpose.msra.mxu0 0.0
      %507 = vmatprep.subr.mxu0 0.0
      %508 = vmatpush1.xpose.msra.mxu0 0.0
      %509 = vmatprep.subr.mxu0 0.0
      %510 = vmatpush1.xpose.msra.mxu0 0.0
      %511 = vmatprep.subr.mxu0 0.0
      %512 = vmatpush1.xpose.msra.mxu0 0.0
      %513 = vmatprep.subr.mxu0 0.0
      %514 = vmatpush1.xpose.msra.mxu0 0.0
      %515 = vmatprep.subr.mxu0 0.0
      %516 = vmatpush1.xpose.msra.mxu0 0.0
      %517 = vmatprep.subr.mxu0 0.0
      %518 = vmatpush1.xpose.msra.mxu0 0.0
      %519 = vmatprep.mubr.f32.mxu0 0.0
      %520 = vmatmul.mubr.f32.gmra.mrb[0].mxu0 %v447
      %v521 = vpop.f32.mrb[0].mxu0
      %v522 = vadd.f32 0.0, %v521
      %v523 = vpop.f32.mrb[0].mxu0
      %524 = vmatprep.mubr.f32.mxu0 0.0
      %525 = vmatmul.mubr.f32.gmra.mrb[0].mxu0 %v449
      %v526 = vpop.f32.mrb[0].mxu0
      %v527 = vadd.f32 0.0, %v526
      %v528 = vpop.f32.mrb[0].mxu0
      %529 = vdwg.mxu0
      %532 = vrot.lane.b32.xlu0 %v431, 96
      %v533 = vpop.permute.xlu0 %532
      %534 = vrot.lane.b32.xlu0 %v432, 96
      %v535 = vpop.permute.xlu0 %534
      %536 = vrot.lane.b32.xlu0 %v431, 64
      %v537 = vpop.permute.xlu0 %536
      %538 = vrot.lane.b32.xlu0 %v432, 64
      %v539 = vpop.permute.xlu0 %538
      %v540 = vsel %vm299, %v533, 0
      %v542 = vsel %vm299, %v535, 0
      %v544 = vsel %vm299, %v537, 0
      %v546 = vsel %vm299, %v539, 0
      %548 = vmatprep.subr.mxu0 0.0
      %549 = vmatpush1.xpose.msra.mxu0 %v544
      %550 = vmatprep.subr.mxu0 0.0
      %551 = vmatpush1.xpose.msra.mxu0 %v546
      %552 = vmatprep.subr.mxu0 0.0
      %553 = vmatpush1.xpose.msra.mxu0 0.0
      %554 = vmatprep.subr.mxu0 0.0
      %555 = vmatpush1.xpose.msra.mxu0 0.0
      %556 = vmatprep.subr.mxu0 0.0
      %557 = vmatpush1.xpose.msra.mxu0 0.0
      %558 = vmatprep.subr.mxu0 0.0
      %559 = vmatpush1.xpose.msra.mxu0 0.0
      %560 = vmatprep.subr.mxu0 0.0
      %561 = vmatpush1.xpose.msra.mxu0 0.0
      %562 = vmatprep.subr.mxu0 0.0
      %563 = vmatpush1.xpose.msra.mxu0 0.0
      %564 = vmatprep.subr.mxu0 0.0
      %565 = vmatpush1.xpose.msra.mxu0 0.0
      %566 = vmatprep.subr.mxu0 0.0
      %567 = vmatpush1.xpose.msra.mxu0 0.0
      %568 = vmatprep.subr.mxu0 0.0
      %569 = vmatpush1.xpose.msra.mxu0 0.0
      %570 = vmatprep.subr.mxu0 0.0
      %571 = vmatpush1.xpose.msra.mxu0 0.0
      %572 = vmatprep.subr.mxu0 0.0
      %573 = vmatpush1.xpose.msra.mxu0 0.0
      %574 = vmatprep.subr.mxu0 0.0
      %575 = vmatpush1.xpose.msra.mxu0 0.0
      %576 = vmatprep.subr.mxu0 0.0
      %577 = vmatpush1.xpose.msra.mxu0 0.0
      %578 = vmatprep.subr.mxu0 0.0
      %579 = vmatpush1.xpose.msra.mxu0 0.0
      %580 = vmatprep.subr.mxu0 0.0
      %581 = vmatpush1.xpose.msra.mxu0 0.0
      %582 = vmatprep.subr.mxu0 0.0
      %583 = vmatpush1.xpose.msra.mxu0 0.0
      %584 = vmatprep.subr.mxu0 0.0
      %585 = vmatpush1.xpose.msra.mxu0 0.0
      %586 = vmatprep.subr.mxu0 0.0
      %587 = vmatpush1.xpose.msra.mxu0 0.0
      %588 = vmatprep.subr.mxu0 0.0
      %589 = vmatpush1.xpose.msra.mxu0 0.0
      %590 = vmatprep.subr.mxu0 0.0
      %591 = vmatpush1.xpose.msra.mxu0 0.0
      %592 = vmatprep.subr.mxu0 0.0
      %593 = vmatpush1.xpose.msra.mxu0 0.0
      %594 = vmatprep.subr.mxu0 0.0
      %595 = vmatpush1.xpose.msra.mxu0 0.0
      %596 = vmatprep.subr.mxu0 0.0
      %597 = vmatpush1.xpose.msra.mxu0 0.0
      %598 = vmatprep.subr.mxu0 0.0
      %599 = vmatpush1.xpose.msra.mxu0 0.0
      %600 = vmatprep.subr.mxu0 0.0
      %601 = vmatpush1.xpose.msra.mxu0 0.0
      %602 = vmatprep.subr.mxu0 0.0
      %603 = vmatpush1.xpose.msra.mxu0 0.0
      %604 = vmatprep.subr.mxu0 0.0
      %605 = vmatpush1.xpose.msra.mxu0 0.0
      %606 = vmatprep.subr.mxu0 0.0
      %607 = vmatpush1.xpose.msra.mxu0 0.0
      %608 = vmatprep.subr.mxu0 0.0
      %609 = vmatpush1.xpose.msra.mxu0 0.0
      %610 = vmatprep.subr.mxu0 0.0
      %611 = vmatpush1.xpose.msra.mxu0 0.0
      %612 = vmatprep.mubr.f32.mxu0 0.0
      %613 = vmatmul.mubr.f32.gmra.mrb[0].mxu0 %v540
      %v614 = vpop.f32.mrb[0].mxu0
      %v615 = vadd.f32 0.0, %v614
      %v616 = vpop.f32.mrb[0].mxu0
      %617 = vmatprep.mubr.f32.mxu0 0.0
      %618 = vmatmul.mubr.f32.gmra.mrb[0].mxu0 %v542
      %v619 = vpop.f32.mrb[0].mxu0
      %v620 = vadd.f32 0.0, %v619
      %v621 = vpop.f32.mrb[0].mxu0
      %622 = vdwg.mxu0
      %625 = vrot.lane.b32.xlu0 %v433, 96
      %v626 = vpop.permute.xlu0 %625
      %627 = vrot.lane.b32.xlu0 %v434, 96
      %v628 = vpop.permute.xlu0 %627
      %629 = vrot.lane.b32.xlu0 %v433, 64
      %v630 = vpop.permute.xlu0 %629
      %631 = vrot.lane.b32.xlu0 %v434, 64
      %v632 = vpop.permute.xlu0 %631
      %v633 = vsel %vm299, %v626, 0
      %v635 = vsel %vm299, %v628, 0
      %v637 = vsel %vm299, %v630, 0
      %v639 = vsel %vm299, %v632, 0
      %641 = vmatprep.subr.mxu0 0.0
      %642 = vmatpush1.xpose.msra.mxu0 %v637
      %643 = vmatprep.subr.mxu0 0.0
      %644 = vmatpush1.xpose.msra.mxu0 %v639
      %645 = vmatprep.subr.mxu0 0.0
      %646 = vmatpush1.xpose.msra.mxu0 0.0
      %647 = vmatprep.subr.mxu0 0.0
      %648 = vmatpush1.xpose.msra.mxu0 0.0
      %649 = vmatprep.subr.mxu0 0.0
      %650 = vmatpush1.xpose.msra.mxu0 0.0
      %651 = vmatprep.subr.mxu0 0.0
      %652 = vmatpush1.xpose.msra.mxu0 0.0
      %653 = vmatprep.subr.mxu0 0.0
      %654 = vmatpush1.xpose.msra.mxu0 0.0
      %655 = vmatprep.subr.mxu0 0.0
      %656 = vmatpush1.xpose.msra.mxu0 0.0
      %657 = vmatprep.subr.mxu0 0.0
      %658 = vmatpush1.xpose.msra.mxu0 0.0
      %659 = vmatprep.subr.mxu0 0.0
      %660 = vmatpush1.xpose.msra.mxu0 0.0
      %661 = vmatprep.subr.mxu0 0.0
      %662 = vmatpush1.xpose.msra.mxu0 0.0
      %663 = vmatprep.subr.mxu0 0.0
      %664 = vmatpush1.xpose.msra.mxu0 0.0
      %665 = vmatprep.subr.mxu0 0.0
      %666 = vmatpush1.xpose.msra.mxu0 0.0
      %667 = vmatprep.subr.mxu0 0.0
      %668 = vmatpush1.xpose.msra.mxu0 0.0
      %669 = vmatprep.subr.mxu0 0.0
      %670 = vmatpush1.xpose.msra.mxu0 0.0
      %671 = vmatprep.subr.mxu0 0.0
      %672 = vmatpush1.xpose.msra.mxu0 0.0
      %673 = vmatprep.subr.mxu0 0.0
      %674 = vmatpush1.xpose.msra.mxu0 0.0
      %675 = vmatprep.subr.mxu0 0.0
      %676 = vmatpush1.xpose.msra.mxu0 0.0
      %677 = vmatprep.subr.mxu0 0.0
      %678 = vmatpush1.xpose.msra.mxu0 0.0
      %679 = vmatprep.subr.mxu0 0.0
      %680 = vmatpush1.xpose.msra.mxu0 0.0
      %681 = vmatprep.subr.mxu0 0.0
      %682 = vmatpush1.xpose.msra.mxu0 0.0
      %683 = vmatprep.subr.mxu0 0.0
      %684 = vmatpush1.xpose.msra.mxu0 0.0
      %685 = vmatprep.subr.mxu0 0.0
      %686 = vmatpush1.xpose.msra.mxu0 0.0
      %687 = vmatprep.subr.mxu0 0.0
      %688 = vmatpush1.xpose.msra.mxu0 0.0
      %689 = vmatprep.subr.mxu0 0.0
      %690 = vmatpush1.xpose.msra.mxu0 0.0
      %691 = vmatprep.subr.mxu0 0.0
      %692 = vmatpush1.xpose.msra.mxu0 0.0
      %693 = vmatprep.subr.mxu0 0.0
      %694 = vmatpush1.xpose.msra.mxu0 0.0
      %695 = vmatprep.subr.mxu0 0.0
      %696 = vmatpush1.xpose.msra.mxu0 0.0
      %697 = vmatprep.subr.mxu0 0.0
      %698 = vmatpush1.xpose.msra.mxu0 0.0
      %699 = vmatprep.subr.mxu0 0.0
      %700 = vmatpush1.xpose.msra.mxu0 0.0
      %701 = vmatprep.subr.mxu0 0.0
      %702 = vmatpush1.xpose.msra.mxu0 0.0
      %703 = vmatprep.subr.mxu0 0.0
      %704 = vmatpush1.xpose.msra.mxu0 0.0
      %705 = vmatprep.mubr.f32.mxu0 0.0
      %706 = vmatmul.mubr.f32.gmra.mrb[0].mxu0 %v633
      %v707 = vpop.f32.mrb[0].mxu0
      %v708 = vadd.f32 0.0, %v707
      %v709 = vpop.f32.mrb[0].mxu0
      %710 = vmatprep.mubr.f32.mxu0 0.0
      %711 = vmatmul.mubr.f32.gmra.mrb[0].mxu0 %v635
      %v712 = vpop.f32.mrb[0].mxu0
      %v713 = vadd.f32 0.0, %v712
      %v714 = vpop.f32.mrb[0].mxu0
      %715 = vdwg.mxu0
      %718 = vrot.lane.b32.xlu0 %v435, 96
      %v719 = vpop.permute.xlu0 %718
      %720 = vrot.lane.b32.xlu0 %v436, 96
      %v721 = vpop.permute.xlu0 %720
      %722 = vrot.lane.b32.xlu0 %v435, 64
      %v723 = vpop.permute.xlu0 %722
      %724 = vrot.lane.b32.xlu0 %v436, 64
      %v725 = vpop.permute.xlu0 %724
      %v726 = vsel %vm299, %v719, 0
      %v728 = vsel %vm299, %v721, 0
      %v730 = vsel %vm299, %v723, 0
      %v732 = vsel %vm299, %v725, 0
      %734 = vmatprep.subr.mxu0 0.0
      %735 = vmatpush1.xpose.msra.mxu0 %v730
      %736 = vmatprep.subr.mxu0 0.0
      %737 = vmatpush1.xpose.msra.mxu0 %v732
      %738 = vmatprep.subr.mxu0 0.0
      %739 = vmatpush1.xpose.msra.mxu0 0.0
      %740 = vmatprep.subr.mxu0 0.0
      %741 = vmatpush1.xpose.msra.mxu0 0.0
      %742 = vmatprep.subr.mxu0 0.0
      %743 = vmatpush1.xpose.msra.mxu0 0.0
      %744 = vmatprep.subr.mxu0 0.0
      %745 = vmatpush1.xpose.msra.mxu0 0.0
      %746 = vmatprep.subr.mxu0 0.0
      %747 = vmatpush1.xpose.msra.mxu0 0.0
      %748 = vmatprep.subr.mxu0 0.0
      %749 = vmatpush1.xpose.msra.mxu0 0.0
      %750 = vmatprep.subr.mxu0 0.0
      %751 = vmatpush1.xpose.msra.mxu0 0.0
      %752 = vmatprep.subr.mxu0 0.0
      %753 = vmatpush1.xpose.msra.mxu0 0.0
      %754 = vmatprep.subr.mxu0 0.0
      %755 = vmatpush1.xpose.msra.mxu0 0.0
      %756 = vmatprep.subr.mxu0 0.0
      %757 = vmatpush1.xpose.msra.mxu0 0.0
      %758 = vmatprep.subr.mxu0 0.0
      %759 = vmatpush1.xpose.msra.mxu0 0.0
      %760 = vmatprep.subr.mxu0 0.0
      %761 = vmatpush1.xpose.msra.mxu0 0.0
      %762 = vmatprep.subr.mxu0 0.0
      %763 = vmatpush1.xpose.msra.mxu0 0.0
      %764 = vmatprep.subr.mxu0 0.0
      %765 = vmatpush1.xpose.msra.mxu0 0.0
      %766 = vmatprep.subr.mxu0 0.0
      %767 = vmatpush1.xpose.msra.mxu0 0.0
      %768 = vmatprep.subr.mxu0 0.0
      %769 = vmatpush1.xpose.msra.mxu0 0.0
      %770 = vmatprep.subr.mxu0 0.0
      %771 = vmatpush1.xpose.msra.mxu0 0.0
      %772 = vmatprep.subr.mxu0 0.0
      %773 = vmatpush1.xpose.msra.mxu0 0.0
      %774 = vmatprep.subr.mxu0 0.0
      %775 = vmatpush1.xpose.msra.mxu0 0.0
      %776 = vmatprep.subr.mxu0 0.0
      %777 = vmatpush1.xpose.msra.mxu0 0.0
      %778 = vmatprep.subr.mxu0 0.0
      %779 = vmatpush1.xpose.msra.mxu0 0.0
      %780 = vmatprep.subr.mxu0 0.0
      %781 = vmatpush1.xpose.msra.mxu0 0.0
      %782 = vmatprep.subr.mxu0 0.0
      %783 = vmatpush1.xpose.msra.mxu0 0.0
      %784 = vmatprep.subr.mxu0 0.0
      %785 = vmatpush1.xpose.msra.mxu0 0.0
      %786 = vmatprep.subr.mxu0 0.0
      %787 = vmatpush1.xpose.msra.mxu0 0.0
      %788 = vmatprep.subr.mxu0 0.0
      %789 = vmatpush1.xpose.msra.mxu0 0.0
      %790 = vmatprep.subr.mxu0 0.0
      %791 = vmatpush1.xpose.msra.mxu0 0.0
      %792 = vmatprep.subr.mxu0 0.0
      %793 = vmatpush1.xpose.msra.mxu0 0.0
      %794 = vmatprep.subr.mxu0 0.0
      %795 = vmatpush1.xpose.msra.mxu0 0.0
      %796 = vmatprep.subr.mxu0 0.0
      %797 = vmatpush1.xpose.msra.mxu0 0.0
      %798 = vmatprep.mubr.f32.mxu0 0.0
      %799 = vmatmul.mubr.f32.gmra.mrb[0].mxu0 %v726
      %v800 = vpop.f32.mrb[0].mxu0
      %v801 = vadd.f32 0.0, %v800
      %v802 = vpop.f32.mrb[0].mxu0
      %803 = vmatprep.mubr.f32.mxu0 0.0
      %804 = vmatmul.mubr.f32.gmra.mrb[0].mxu0 %v728
      %v805 = vpop.f32.mrb[0].mxu0
      %v806 = vadd.f32 0.0, %v805
      %v807 = vpop.f32.mrb[0].mxu0
      %808 = vdwg.mxu0
      %v809 = vld [vmem:[%s272] sm:$0x3]
      %v810 = vld [vmem:[%s272 + $0x2] sm:$0x3]
      %v811 = vld [vmem:[%s272 + $0x4] sm:$0x3]
      %v812 = vld [vmem:[%s272 + $0x6] sm:$0x3]
      %v813 = vld [vmem:[%s272 + $0x8] sm:$0x3]
      %v814 = vld [vmem:[%s272 + $0xa] sm:$0x3]
      %v815 = vld [vmem:[%s272 + $0xc] sm:$0x3]
      %v816 = vld [vmem:[%s272 + $0xe] sm:$0x3]
      %v817 = vunpack.c.0.s8 %v809
      %v818 = vunpack.c.0.s8 %v810
      %v819 = vunpack.c.0.s8 %v811
      %v820 = vunpack.c.0.s8 %v812
      %v821 = vunpack.c.0.s8 %v813
      %v822 = vunpack.c.0.s8 %v814
      %v823 = vunpack.c.0.s8 %v815
      %v824 = vunpack.c.0.s8 %v816
      %v825 = vcvt.s32.f32 %v817
      %v826 = vcvt.s32.f32 %v818
      %v827 = vcvt.s32.f32 %v819
      %v828 = vcvt.s32.f32 %v820
      %v829 = vcvt.s32.f32 %v821
      %v830 = vcvt.s32.f32 %v822
      %v831 = vcvt.s32.f32 %v823
      %v832 = vcvt.s32.f32 %v824
      %vm833 = vcmp.gt.f32.partialorder %v825, 0.0
      %vm834 = vcmp.gt.f32.partialorder %v826, 0.0
      %vm835 = vcmp.gt.f32.partialorder %v827, 0.0
      %vm836 = vcmp.gt.f32.partialorder %v828, 0.0
      %vm837 = vcmp.gt.f32.partialorder %v829, 0.0
      %vm838 = vcmp.gt.f32.partialorder %v830, 0.0
      %vm839 = vcmp.gt.f32.partialorder %v831, 0.0
      %vm840 = vcmp.gt.f32.partialorder %v832, 0.0
      %v841 = vsel %vm833, %v522, -9e+15
      %v842 = vsel %vm834, %v527, -9e+15
      %v843 = vsel %vm835, %v615, -9e+15
      %v844 = vsel %vm836, %v620, -9e+15
      %v845 = vsel %vm837, %v708, -9e+15
      %v846 = vsel %vm838, %v713, -9e+15
      %v847 = vsel %vm839, %v801, -9e+15
      %v848 = vsel %vm840, %v806, -9e+15
      %vm849 = vcmask 130048
      %v850 = vsel %vm849, %v841, -inf
      %851 = vmax.xlane.f32.xlu0 %v850
      %v852 = vpop.xlane.xlu0 %851
      %v853 = vsel %vm849, %v842, -inf
      %854 = vmax.xlane.f32.xlu0 %v853
      %v855 = vpop.xlane.xlu0 %854
      %v856 = vsel %vm849, %v843, -inf
      %857 = vmax.xlane.f32.xlu0 %v856
      %v858 = vpop.xlane.xlu0 %857
      %v859 = vsel %vm849, %v844, -inf
      %860 = vmax.xlane.f32.xlu0 %v859
      %v861 = vpop.xlane.xlu0 %860
      %v862 = vsel %vm849, %v845, -inf
      %863 = vmax.xlane.f32.xlu0 %v862
      %v864 = vpop.xlane.xlu0 %863
      %v865 = vsel %vm849, %v846, -inf
      %866 = vmax.xlane.f32.xlu0 %v865
      %v867 = vpop.xlane.xlu0 %866
      %v868 = vsel %vm849, %v847, -inf
      %869 = vmax.xlane.f32.xlu0 %v868
      %v870 = vpop.xlane.xlu0 %869
      %v871 = vsel %vm849, %v848, -inf
      %872 = vmax.xlane.f32.xlu0 %v871
      %v873 = vpop.xlane.xlu0 %872
      %v874 = vsub.f32 %v841, %v852
      %v875 = vsub.f32 %v842, %v855
      %v876 = vsub.f32 %v843, %v858
      %v877 = vsub.f32 %v844, %v861
      %v878 = vsub.f32 %v845, %v864
      %v879 = vsub.f32 %v846, %v867
      %v880 = vsub.f32 %v847, %v870
      %v881 = vsub.f32 %v848, %v873
      %v882 = vmul.f32 %v874, 1.442695
      %v883 = vpow.pop %v882
      %v884 = vmul.f32 %v875, 1.442695
      %v885 = vpow.pop %v884
      %v886 = vmul.f32 %v876, 1.442695
      %v887 = vpow.pop %v886
      %v888 = vmul.f32 %v877, 1.442695
      %v889 = vpow.pop %v888
      %v890 = vmul.f32 %v878, 1.442695
      %v891 = vpow.pop %v890
      %v892 = vmul.f32 %v879, 1.442695
      %v893 = vpow.pop %v892
      %v894 = vmul.f32 %v880, 1.442695
      %v895 = vpow.pop %v894
      %v896 = vmul.f32 %v881, 1.442695
      %v897 = vpow.pop %v896
      %v898 = vsel %vm849, %v883, 0.0
      %899 = vadd.xlane.f32.xlu0 %v898
      %v900 = vpop.xlane.xlu0 %899
      %v901 = vsel %vm849, %v885, 0.0
      %902 = vadd.xlane.f32.xlu0 %v901
      %v903 = vpop.xlane.xlu0 %902
      %v904 = vsel %vm849, %v887, 0.0
      %905 = vadd.xlane.f32.xlu0 %v904
      %v906 = vpop.xlane.xlu0 %905
      %v907 = vsel %vm849, %v889, 0.0
      %908 = vadd.xlane.f32.xlu0 %v907
      %v909 = vpop.xlane.xlu0 %908
      %v910 = vsel %vm849, %v891, 0.0
      %911 = vadd.xlane.f32.xlu0 %v910
      %v912 = vpop.xlane.xlu0 %911
      %v913 = vsel %vm849, %v893, 0.0
      %914 = vadd.xlane.f32.xlu0 %v913
      %v915 = vpop.xlane.xlu0 %914
      %v916 = vsel %vm849, %v895, 0.0
      %917 = vadd.xlane.f32.xlu0 %v916
      %v918 = vpop.xlane.xlu0 %917
      %v919 = vsel %vm849, %v897, 0.0
      %920 = vadd.xlane.f32.xlu0 %v919
      %v921 = vpop.xlane.xlu0 %920
      %v922 = vrcp.pop %v900
      %v923 = vrcp.pop %v903
      %v924 = vrcp.pop %v906
      %v925 = vrcp.pop %v909
      %v926 = vrcp.pop %v912
      %v927 = vrcp.pop %v915
      %v928 = vrcp.pop %v918
      %v929 = vrcp.pop %v921
      %v930 = vmul.f32 %v883, %v922
      %v931 = vmul.f32 %v885, %v923
      %v932 = vmul.f32 %v887, %v924
      %v933 = vmul.f32 %v889, %v925
      %v934 = vmul.f32 %v891, %v926
      %v935 = vmul.f32 %v893, %v927
      %v936 = vmul.f32 %v895, %v928
      %v937 = vmul.f32 %v897, %v929
      %v939 = vsel %vm849, %v930, 0
      %v942 = vsel %vm849, %v931, 0
      %944 = vmatprep.subr.mxu0 0.0
      %945 = vmatpush1.msra.mxu0 %v429
      %946 = vmatprep.subr.mxu0 0.0
      %947 = vmatpush1.msra.mxu0 %v430
      %948 = vmatprep.subr.mxu0 0.0
      %949 = vmatpush1.msra.mxu0 0.0
      %950 = vmatprep.subr.mxu0 0.0
      %951 = vmatpush1.msra.mxu0 0.0
      %952 = vmatprep.subr.mxu0 0.0
      %953 = vmatpush1.msra.mxu0 0.0
      %954 = vmatprep.subr.mxu0 0.0
      %955 = vmatpush1.msra.mxu0 0.0
      %956 = vmatprep.subr.mxu0 0.0
      %957 = vmatpush1.msra.mxu0 0.0
      %958 = vmatprep.subr.mxu0 0.0
      %959 = vmatpush1.msra.mxu0 0.0
      %960 = vmatprep.subr.mxu0 0.0
      %961 = vmatpush1.msra.mxu0 0.0
      %962 = vmatprep.subr.mxu0 0.0
      %963 = vmatpush1.msra.mxu0 0.0
      %964 = vmatprep.subr.mxu0 0.0
      %965 = vmatpush1.msra.mxu0 0.0
      %966 = vmatprep.subr.mxu0 0.0
      %967 = vmatpush1.msra.mxu0 0.0
      %968 = vmatprep.subr.mxu0 0.0
      %969 = vmatpush1.msra.mxu0 0.0
      %970 = vmatprep.subr.mxu0 0.0
      %971 = vmatpush1.msra.mxu0 0.0
      %972 = vmatprep.subr.mxu0 0.0
      %973 = vmatpush1.msra.mxu0 0.0
      %974 = vmatprep.subr.mxu0 0.0
      %975 = vmatpush1.msra.mxu0 0.0
      %976 = vmatprep.subr.mxu0 0.0
      %977 = vmatpush1.msra.mxu0 0.0
      %978 = vmatprep.subr.mxu0 0.0
      %979 = vmatpush1.msra.mxu0 0.0
      %980 = vmatprep.subr.mxu0 0.0
      %981 = vmatpush1.msra.mxu0 0.0
      %982 = vmatprep.subr.mxu0 0.0
      %983 = vmatpush1.msra.mxu0 0.0
      %984 = vmatprep.subr.mxu0 0.0
      %985 = vmatpush1.msra.mxu0 0.0
      %986 = vmatprep.subr.mxu0 0.0
      %987 = vmatpush1.msra.mxu0 0.0
      %988 = vmatprep.subr.mxu0 0.0
      %989 = vmatpush1.msra.mxu0 0.0
      %990 = vmatprep.subr.mxu0 0.0
      %991 = vmatpush1.msra.mxu0 0.0
      %992 = vmatprep.subr.mxu0 0.0
      %993 = vmatpush1.msra.mxu0 0.0
      %994 = vmatprep.subr.mxu0 0.0
      %995 = vmatpush1.msra.mxu0 0.0
      %996 = vmatprep.subr.mxu0 0.0
      %997 = vmatpush1.msra.mxu0 0.0
      %998 = vmatprep.subr.mxu0 0.0
      %999 = vmatpush1.msra.mxu0 0.0
      %1000 = vmatprep.subr.mxu0 0.0
      %1001 = vmatpush1.msra.mxu0 0.0
      %1002 = vmatprep.subr.mxu0 0.0
      %1003 = vmatpush1.msra.mxu0 0.0
      %1004 = vmatprep.subr.mxu0 0.0
      %1005 = vmatpush1.msra.mxu0 0.0
      %1006 = vmatprep.subr.mxu0 0.0
      %1007 = vmatpush1.msra.mxu0 0.0
      %1008 = vmatprep.mubr.f32.mxu0 0.0
      %1009 = vmatmul.mubr.f32.gmra.mrb[0].mxu0 %v939
      %v1010 = vpop.f32.mrb[0].mxu0
      %v1011 = vadd.f32 0.0, %v1010
      %v1012 = vpop.f32.mrb[0].mxu0
      %1013 = vmatprep.mubr.f32.mxu0 0.0
      %1014 = vmatmul.mubr.f32.gmra.mrb[0].mxu0 %v942
      %v1015 = vpop.f32.mrb[0].mxu0
      %v1016 = vadd.f32 0.0, %v1015
      %v1017 = vpop.f32.mrb[0].mxu0
      %1018 = vdwg.mxu0
      %v1020 = vsel %vm849, %v932, 0
      %v1023 = vsel %vm849, %v933, 0
      %1025 = vmatprep.subr.mxu0 0.0
      %1026 = vmatpush1.msra.mxu0 %v431
      %1027 = vmatprep.subr.mxu0 0.0
      %1028 = vmatpush1.msra.mxu0 %v432
      %1029 = vmatprep.subr.mxu0 0.0
      %1030 = vmatpush1.msra.mxu0 0.0
      %1031 = vmatprep.subr.mxu0 0.0
      %1032 = vmatpush1.msra.mxu0 0.0
      %1033 = vmatprep.subr.mxu0 0.0
      %1034 = vmatpush1.msra.mxu0 0.0
      %1035 = vmatprep.subr.mxu0 0.0
      %1036 = vmatpush1.msra.mxu0 0.0
      %1037 = vmatprep.subr.mxu0 0.0
      %1038 = vmatpush1.msra.mxu0 0.0
      %1039 = vmatprep.subr.mxu0 0.0
      %1040 = vmatpush1.msra.mxu0 0.0
      %1041 = vmatprep.subr.mxu0 0.0
      %1042 = vmatpush1.msra.mxu0 0.0
      %1043 = vmatprep.subr.mxu0 0.0
      %1044 = vmatpush1.msra.mxu0 0.0
      %1045 = vmatprep.subr.mxu0 0.0
      %1046 = vmatpush1.msra.mxu0 0.0
      %1047 = vmatprep.subr.mxu0 0.0
      %1048 = vmatpush1.msra.mxu0 0.0
      %1049 = vmatprep.subr.mxu0 0.0
      %1050 = vmatpush1.msra.mxu0 0.0
      %1051 = vmatprep.subr.mxu0 0.0
      %1052 = vmatpush1.msra.mxu0 0.0
      %1053 = vmatprep.subr.mxu0 0.0
      %1054 = vmatpush1.msra.mxu0 0.0
      %1055 = vmatprep.subr.mxu0 0.0
      %1056 = vmatpush1.msra.mxu0 0.0
      %1057 = vmatprep.subr.mxu0 0.0
      %1058 = vmatpush1.msra.mxu0 0.0
      %1059 = vmatprep.subr.mxu0 0.0
      %1060 = vmatpush1.msra.mxu0 0.0
      %1061 = vmatprep.subr.mxu0 0.0
      %1062 = vmatpush1.msra.mxu0 0.0
      %1063 = vmatprep.subr.mxu0 0.0
      %1064 = vmatpush1.msra.mxu0 0.0
      %1065 = vmatprep.subr.mxu0 0.0
      %1066 = vmatpush1.msra.mxu0 0.0
      %1067 = vmatprep.subr.mxu0 0.0
      %1068 = vmatpush1.msra.mxu0 0.0
      %1069 = vmatprep.subr.mxu0 0.0
      %1070 = vmatpush1.msra.mxu0 0.0
      %1071 = vmatprep.subr.mxu0 0.0
      %1072 = vmatpush1.msra.mxu0 0.0
      %1073 = vmatprep.subr.mxu0 0.0
      %1074 = vmatpush1.msra.mxu0 0.0
      %1075 = vmatprep.subr.mxu0 0.0
      %1076 = vmatpush1.msra.mxu0 0.0
      %1077 = vmatprep.subr.mxu0 0.0
      %1078 = vmatpush1.msra.mxu0 0.0
      %1079 = vmatprep.subr.mxu0 0.0
      %1080 = vmatpush1.msra.mxu0 0.0
      %1081 = vmatprep.subr.mxu0 0.0
      %1082 = vmatpush1.msra.mxu0 0.0
      %1083 = vmatprep.subr.mxu0 0.0
      %1084 = vmatpush1.msra.mxu0 0.0
      %1085 = vmatprep.subr.mxu0 0.0
      %1086 = vmatpush1.msra.mxu0 0.0
      %1087 = vmatprep.subr.mxu0 0.0
      %1088 = vmatpush1.msra.mxu0 0.0
      %1089 = vmatprep.mubr.f32.mxu0 0.0
      %1090 = vmatmul.mubr.f32.gmra.mrb[0].mxu0 %v1020
      %v1091 = vpop.f32.mrb[0].mxu0
      %v1092 = vadd.f32 0.0, %v1091
      %v1093 = vpop.f32.mrb[0].mxu0
      %1094 = vmatprep.mubr.f32.mxu0 0.0
      %1095 = vmatmul.mubr.f32.gmra.mrb[0].mxu0 %v1023
      %v1096 = vpop.f32.mrb[0].mxu0
      %v1097 = vadd.f32 0.0, %v1096
      %v1098 = vpop.f32.mrb[0].mxu0
      %1099 = vdwg.mxu0
      %v1101 = vsel %vm849, %v934, 0
      %v1104 = vsel %vm849, %v935, 0
      %1106 = vmatprep.subr.mxu0 0.0
      %1107 = vmatpush1.msra.mxu0 %v433
      %1108 = vmatprep.subr.mxu0 0.0
      %1109 = vmatpush1.msra.mxu0 %v434
      %1110 = vmatprep.subr.mxu0 0.0
      %1111 = vmatpush1.msra.mxu0 0.0
      %1112 = vmatprep.subr.mxu0 0.0
      %1113 = vmatpush1.msra.mxu0 0.0
      %1114 = vmatprep.subr.mxu0 0.0
      %1115 = vmatpush1.msra.mxu0 0.0
      %1116 = vmatprep.subr.mxu0 0.0
      %1117 = vmatpush1.msra.mxu0 0.0
      %1118 = vmatprep.subr.mxu0 0.0
      %1119 = vmatpush1.msra.mxu0 0.0
      %1120 = vmatprep.subr.mxu0 0.0
      %1121 = vmatpush1.msra.mxu0 0.0
      %1122 = vmatprep.subr.mxu0 0.0
      %1123 = vmatpush1.msra.mxu0 0.0
      %1124 = vmatprep.subr.mxu0 0.0
      %1125 = vmatpush1.msra.mxu0 0.0
      %1126 = vmatprep.subr.mxu0 0.0
      %1127 = vmatpush1.msra.mxu0 0.0
      %1128 = vmatprep.subr.mxu0 0.0
      %1129 = vmatpush1.msra.mxu0 0.0
      %1130 = vmatprep.subr.mxu0 0.0
      %1131 = vmatpush1.msra.mxu0 0.0
      %1132 = vmatprep.subr.mxu0 0.0
      %1133 = vmatpush1.msra.mxu0 0.0
      %1134 = vmatprep.subr.mxu0 0.0
      %1135 = vmatpush1.msra.mxu0 0.0
      %1136 = vmatprep.subr.mxu0 0.0
      %1137 = vmatpush1.msra.mxu0 0.0
      %1138 = vmatprep.subr.mxu0 0.0
      %1139 = vmatpush1.msra.mxu0 0.0
      %1140 = vmatprep.subr.mxu0 0.0
      %1141 = vmatpush1.msra.mxu0 0.0
      %1142 = vmatprep.subr.mxu0 0.0
      %1143 = vmatpush1.msra.mxu0 0.0
      %1144 = vmatprep.subr.mxu0 0.0
      %1145 = vmatpush1.msra.mxu0 0.0
      %1146 = vmatprep.subr.mxu0 0.0
      %1147 = vmatpush1.msra.mxu0 0.0
      %1148 = vmatprep.subr.mxu0 0.0
      %1149 = vmatpush1.msra.mxu0 0.0
      %1150 = vmatprep.subr.mxu0 0.0
      %1151 = vmatpush1.msra.mxu0 0.0
      %1152 = vmatprep.subr.mxu0 0.0
      %1153 = vmatpush1.msra.mxu0 0.0
      %1154 = vmatprep.subr.mxu0 0.0
      %1155 = vmatpush1.msra.mxu0 0.0
      %1156 = vmatprep.subr.mxu0 0.0
      %1157 = vmatpush1.msra.mxu0 0.0
      %1158 = vmatprep.subr.mxu0 0.0
      %1159 = vmatpush1.msra.mxu0 0.0
      %1160 = vmatprep.subr.mxu0 0.0
      %1161 = vmatpush1.msra.mxu0 0.0
      %1162 = vmatprep.subr.mxu0 0.0
      %1163 = vmatpush1.msra.mxu0 0.0
      %1164 = vmatprep.subr.mxu0 0.0
      %1165 = vmatpush1.msra.mxu0 0.0
      %1166 = vmatprep.subr.mxu0 0.0
      %1167 = vmatpush1.msra.mxu0 0.0
      %1168 = vmatprep.subr.mxu0 0.0
      %1169 = vmatpush1.msra.mxu0 0.0
      %1170 = vmatprep.mubr.f32.mxu0 0.0
      %1171 = vmatmul.mubr.f32.gmra.mrb[0].mxu0 %v1101
      %v1172 = vpop.f32.mrb[0].mxu0
      %v1173 = vadd.f32 0.0, %v1172
      %v1174 = vpop.f32.mrb[0].mxu0
      %1175 = vmatprep.mubr.f32.mxu0 0.0
      %1176 = vmatmul.mubr.f32.gmra.mrb[0].mxu0 %v1104
      %v1177 = vpop.f32.mrb[0].mxu0
      %v1178 = vadd.f32 0.0, %v1177
      %v1179 = vpop.f32.mrb[0].mxu0
      %1180 = vdwg.mxu0
      %v1182 = vsel %vm849, %v936, 0
      %v1185 = vsel %vm849, %v937, 0
      %1187 = vmatprep.subr.mxu0 0.0
      %1188 = vmatpush1.msra.mxu0 %v435
      %1189 = vmatprep.subr.mxu0 0.0
      %1190 = vmatpush1.msra.mxu0 %v436
      %1191 = vmatprep.subr.mxu0 0.0
      %1192 = vmatpush1.msra.mxu0 0.0
      %1193 = vmatprep.subr.mxu0 0.0
      %1194 = vmatpush1.msra.mxu0 0.0
      %1195 = vmatprep.subr.mxu0 0.0
      %1196 = vmatpush1.msra.mxu0 0.0
      %1197 = vmatprep.subr.mxu0 0.0
      %1198 = vmatpush1.msra.mxu0 0.0
      %1199 = vmatprep.subr.mxu0 0.0
      %1200 = vmatpush1.msra.mxu0 0.0
      %1201 = vmatprep.subr.mxu0 0.0
      %1202 = vmatpush1.msra.mxu0 0.0
      %1203 = vmatprep.subr.mxu0 0.0
      %1204 = vmatpush1.msra.mxu0 0.0
      %1205 = vmatprep.subr.mxu0 0.0
      %1206 = vmatpush1.msra.mxu0 0.0
      %1207 = vmatprep.subr.mxu0 0.0
      %1208 = vmatpush1.msra.mxu0 0.0
      %1209 = vmatprep.subr.mxu0 0.0
      %1210 = vmatpush1.msra.mxu0 0.0
      %1211 = vmatprep.subr.mxu0 0.0
      %1212 = vmatpush1.msra.mxu0 0.0
      %1213 = vmatprep.subr.mxu0 0.0
      %1214 = vmatpush1.msra.mxu0 0.0
      %1215 = vmatprep.subr.mxu0 0.0
      %1216 = vmatpush1.msra.mxu0 0.0
      %1217 = vmatprep.subr.mxu0 0.0
      %1218 = vmatpush1.msra.mxu0 0.0
      %1219 = vmatprep.subr.mxu0 0.0
      %1220 = vmatpush1.msra.mxu0 0.0
      %1221 = vmatprep.subr.mxu0 0.0
      %1222 = vmatpush1.msra.mxu0 0.0
      %1223 = vmatprep.subr.mxu0 0.0
      %1224 = vmatpush1.msra.mxu0 0.0
      %1225 = vmatprep.subr.mxu0 0.0
      %1226 = vmatpush1.msra.mxu0 0.0
      %1227 = vmatprep.subr.mxu0 0.0
      %1228 = vmatpush1.msra.mxu0 0.0
      %1229 = vmatprep.subr.mxu0 0.0
      %1230 = vmatpush1.msra.mxu0 0.0
      %1231 = vmatprep.subr.mxu0 0.0
      %1232 = vmatpush1.msra.mxu0 0.0
      %1233 = vmatprep.subr.mxu0 0.0
      %1234 = vmatpush1.msra.mxu0 0.0
      %1235 = vmatprep.subr.mxu0 0.0
      %1236 = vmatpush1.msra.mxu0 0.0
      %1237 = vmatprep.subr.mxu0 0.0
      %1238 = vmatpush1.msra.mxu0 0.0
      %1239 = vmatprep.subr.mxu0 0.0
      %1240 = vmatpush1.msra.mxu0 0.0
      %1241 = vmatprep.subr.mxu0 0.0
      %1242 = vmatpush1.msra.mxu0 0.0
      %1243 = vmatprep.subr.mxu0 0.0
      %1244 = vmatpush1.msra.mxu0 0.0
      %1245 = vmatprep.subr.mxu0 0.0
      %1246 = vmatpush1.msra.mxu0 0.0
      %1247 = vmatprep.subr.mxu0 0.0
      %1248 = vmatpush1.msra.mxu0 0.0
      %1249 = vmatprep.subr.mxu0 0.0
      %1250 = vmatpush1.msra.mxu0 0.0
      %1251 = vmatprep.mubr.f32.mxu0 0.0
      %1252 = vmatmul.mubr.f32.gmra.mrb[0].mxu0 %v1182
      %v1253 = vpop.f32.mrb[0].mxu0
      %v1254 = vadd.f32 0.0, %v1253
      %v1255 = vpop.f32.mrb[0].mxu0
      %1256 = vmatprep.mubr.f32.mxu0 0.0
      %1257 = vmatmul.mubr.f32.gmra.mrb[0].mxu0 %v1185
      %v1258 = vpop.f32.mrb[0].mxu0
      %v1259 = vadd.f32 0.0, %v1258
      %v1260 = vpop.f32.mrb[0].mxu0
      %1261 = vdwg.mxu0
      %v1262 = vld [vmem:[%s4] sm:$0xff]
      %v1263 = vld [vmem:[%s4 + $0x8] sm:$0xff]
      %v1264 = vld [vmem:[%s4 + $0x10] sm:$0xff]
      %v1265 = vld [vmem:[%s4 + $0x18] sm:$0xff]
      %v1266 = vld [vmem:[%s5] sm:$0x1]
      %v1268 = vlaneseq
      %v1269 = vshrl.u32 %v1268, 7
      %v1270 = vsub.s32 0, %v1269
      %v1271 = vrot.slane %v1266, %v1270
      %v1274 = vsel %vm299, %v1011, 0
      %v1277 = vsel %vm299, %v1016, 0
      %v1280 = vsel %vm299, %v1092, 0
      %v1283 = vsel %vm299, %v1097, 0
      %v1286 = vsel %vm299, %v1173, 0
      %v1289 = vsel %vm299, %v1178, 0
      %v1292 = vsel %vm299, %v1254, 0
      %v1295 = vsel %vm299, %v1259, 0
      %1297 = vmatprep.subr.mxu0 0.0
      %1298 = vmatpush1.msra.mxu0 %v1262
      %1299 = vmatprep.subr.mxu0 0.0
      %1300 = vmatpush1.msra.mxu0 %v1263
      %1301 = vmatprep.subr.mxu0 0.0
      %1302 = vmatpush1.msra.mxu0 %v1264
      %1303 = vmatprep.subr.mxu0 0.0
      %1304 = vmatpush1.msra.mxu0 %v1265
      %1305 = vmatprep.subr.mxu0 0.0
      %1306 = vmatpush1.msra.mxu0 0.0
      %1307 = vmatprep.subr.mxu0 0.0
      %1308 = vmatpush1.msra.mxu0 0.0
      %1309 = vmatprep.subr.mxu0 0.0
      %1310 = vmatpush1.msra.mxu0 0.0
      %1311 = vmatprep.subr.mxu0 0.0
      %1312 = vmatpush1.msra.mxu0 0.0
      %1313 = vmatprep.subr.mxu0 0.0
      %1314 = vmatpush1.msra.mxu0 0.0
      %1315 = vmatprep.subr.mxu0 0.0
      %1316 = vmatpush1.msra.mxu0 0.0
      %1317 = vmatprep.subr.mxu0 0.0
      %1318 = vmatpush1.msra.mxu0 0.0
      %1319 = vmatprep.subr.mxu0 0.0
      %1320 = vmatpush1.msra.mxu0 0.0
      %1321 = vmatprep.subr.mxu0 0.0
      %1322 = vmatpush1.msra.mxu0 0.0
      %1323 = vmatprep.subr.mxu0 0.0
      %1324 = vmatpush1.msra.mxu0 0.0
      %1325 = vmatprep.subr.mxu0 0.0
      %1326 = vmatpush1.msra.mxu0 0.0
      %1327 = vmatprep.subr.mxu0 0.0
      %1328 = vmatpush1.msra.mxu0 0.0
      %1329 = vmatprep.subr.mxu0 0.0
      %1330 = vmatpush1.msra.mxu0 0.0
      %1331 = vmatprep.subr.mxu0 0.0
      %1332 = vmatpush1.msra.mxu0 0.0
      %1333 = vmatprep.subr.mxu0 0.0
      %1334 = vmatpush1.msra.mxu0 0.0
      %1335 = vmatprep.subr.mxu0 0.0
      %1336 = vmatpush1.msra.mxu0 0.0
      %1337 = vmatprep.subr.mxu0 0.0
      %1338 = vmatpush1.msra.mxu0 0.0
      %1339 = vmatprep.subr.mxu0 0.0
      %1340 = vmatpush1.msra.mxu0 0.0
      %1341 = vmatprep.subr.mxu0 0.0
      %1342 = vmatpush1.msra.mxu0 0.0
      %1343 = vmatprep.subr.mxu0 0.0
      %1344 = vmatpush1.msra.mxu0 0.0
      %1345 = vmatprep.subr.mxu0 0.0
      %1346 = vmatpush1.msra.mxu0 0.0
      %1347 = vmatprep.subr.mxu0 0.0
      %1348 = vmatpush1.msra.mxu0 0.0
      %1349 = vmatprep.subr.mxu0 0.0
      %1350 = vmatpush1.msra.mxu0 0.0
      %1351 = vmatprep.subr.mxu0 0.0
      %1352 = vmatpush1.msra.mxu0 0.0
      %1353 = vmatprep.subr.mxu0 0.0
      %1354 = vmatpush1.msra.mxu0 0.0
      %1355 = vmatprep.subr.mxu0 0.0
      %1356 = vmatpush1.msra.mxu0 0.0
      %1357 = vmatprep.subr.mxu0 0.0
      %1358 = vmatpush1.msra.mxu0 0.0
      %1359 = vmatprep.subr.mxu0 0.0
      %1360 = vmatpush1.msra.mxu0 0.0
      %1361 = vmatprep.mubr.f32.mxu0 0.0
      %1362 = vmatmul.mubr.f32.gmra.mrb[0].mxu0 %v1274
      %v1363 = vpop.f32.mrb[0].mxu0
      %v1364 = vadd.f32 %v1271, %v1363
      %v1365 = vpop.f32.mrb[0].mxu0
      %1366 = vmatprep.mubr.f32.mxu0 0.0
      %1367 = vmatmul.mubr.f32.gmra.mrb[0].mxu0 %v1277
      %v1368 = vpop.f32.mrb[0].mxu0
      %v1369 = vadd.f32 %v1271, %v1368
      %v1370 = vpop.f32.mrb[0].mxu0
      %1371 = vmatprep.mubr.f32.mxu0 0.0
      %1372 = vmatmul.mubr.f32.gmra.mrb[0].mxu0 %v1280
      %v1373 = vpop.f32.mrb[0].mxu0
      %v1374 = vadd.f32 %v1271, %v1373
      %v1375 = vpop.f32.mrb[0].mxu0
      %1376 = vmatprep.mubr.f32.mxu0 0.0
      %1377 = vmatmul.mubr.f32.gmra.mrb[0].mxu0 %v1283
      %v1378 = vpop.f32.mrb[0].mxu0
      %v1379 = vadd.f32 %v1271, %v1378
      %v1380 = vpop.f32.mrb[0].mxu0
      %1381 = vmatprep.mubr.f32.mxu0 0.0
      %1382 = vmatmul.mubr.f32.gmra.mrb[0].mxu0 %v1286
      %v1383 = vpop.f32.mrb[0].mxu0
      %v1384 = vadd.f32 %v1271, %v1383
      %v1385 = vpop.f32.mrb[0].mxu0
      %1386 = vmatprep.mubr.f32.mxu0 0.0
      %1387 = vmatmul.mubr.f32.gmra.mrb[0].mxu0 %v1289
      %v1388 = vpop.f32.mrb[0].mxu0
      %v1389 = vadd.f32 %v1271, %v1388
      %v1390 = vpop.f32.mrb[0].mxu0
      %1391 = vmatprep.mubr.f32.mxu0 0.0
      %1392 = vmatmul.mubr.f32.gmra.mrb[0].mxu0 %v1292
      %v1393 = vpop.f32.mrb[0].mxu0
      %v1394 = vadd.f32 %v1271, %v1393
      %v1395 = vpop.f32.mrb[0].mxu0
      %1396 = vmatprep.mubr.f32.mxu0 0.0
      %1397 = vmatmul.mubr.f32.gmra.mrb[0].mxu0 %v1295
      %v1398 = vpop.f32.mrb[0].mxu0
      %v1399 = vadd.f32 %v1271, %v1398
      %v1400 = vpop.f32.mrb[0].mxu0
      %1401 = vdwg.mxu0
      %v1402 = vmax.f32 %v1364, 0.0
      %v1403 = vmax.f32 %v1369, 0.0
      %v1404 = vmax.f32 %v1374, 0.0
      %v1405 = vmax.f32 %v1379, 0.0
      %v1406 = vmax.f32 %v1384, 0.0
      %v1407 = vmax.f32 %v1389, 0.0
      %v1408 = vmax.f32 %v1394, 0.0
      %v1409 = vmax.f32 %v1399, 0.0
      %1410 = vst.msk [vmem:[%s278] sm:$0xff] %vm299, %v1402
      %1411 = vst.msk [vmem:[%s278 + $0x8] sm:$0xff] %vm299, %v1403
      %1412 = vst.msk [vmem:[%s278 + $0x10] sm:$0xff] %vm299, %v1404
      %1413 = vst.msk [vmem:[%s278 + $0x18] sm:$0xff] %vm299, %v1405
      %1414 = vst.msk [vmem:[%s278 + $0x20] sm:$0xff] %vm299, %v1406
      %1415 = vst.msk [vmem:[%s278 + $0x28] sm:$0xff] %vm299, %v1407
      %1416 = vst.msk [vmem:[%s278 + $0x30] sm:$0xff] %vm299, %v1408
      %1417 = vst.msk [vmem:[%s278 + $0x38] sm:$0xff] %vm299, %v1409
      %s1418 = smul.u32 8, %s17
      %p1419 = scmp.lt.s32.totalorder %s1418, 15
      %s1420 = scalar_select %p1419, %s1418, 15
      %s1421 = smul.addr %s1420, 8
      %s1422 = scalar_lea.vmem %s6, %s1421
      // Predicated region
      $region45: #{tpu_custom_call.1} parent=43 // pred_check
        %p1423 = pneg %p171
      $region46: #{tpu_custom_call.1} parent=43 // pred_check_branch
        %1425 = sbr.rel (%p1423) target = $region48
      $region47: #{tpu_custom_call.1} parent=43 // pred_region
        %s1426 = smul.u32 8, %s17
      $region48: #{tpu_custom_call.1} parent=43 // pred_fallthru
        _
    $region44: #{tpu_custom_call.1} parent=5 // pred_fallthru
      _
    %p1427 = scmp.le.s32.totalorder 2, %s12
    // Predicated region
    $region49: #{tpu_custom_call.1} parent=5 // pred_check
      %p1428 = pneg %p1427
    $region50: #{tpu_custom_call.1} parent=5 // pred_check_branch
      %1430 = sbr.rel (%p1428) target = $region52
    $region51: #{tpu_custom_call.1} parent=5 // pred_region
      %s1431 = ssub.s32 %s12, 2
      // Predicated region
      $region53: #{tpu_custom_call.1} parent=51 // pred_check
        %p1432 = pneg %p177
      $region54: #{tpu_custom_call.1} parent=51 // pred_check_branch
        %1434 = sbr.rel (%p1432) target = $region56
      $region55: #{tpu_custom_call.1} parent=51 // pred_region
        %s1435 = smul.u32 8, %s18
        %p1436 = scmp.lt.s32.totalorder %s1435, 15
        %s1437 = scalar_select %p1436, %s1435, 15
        %s1438 = smul.addr %s1437, 8
        %s1439 = scalar_lea.vmem %s6, %s1438
      $region56: #{tpu_custom_call.1} parent=51 // pred_fallthru
        _
    $region52: #{tpu_custom_call.1} parent=5 // pred_fallthru
      _
  $region6: #{tpu_custom_call.1} parent=0 // loop_footer
    %s16 = sadd.s32 1, %s12
  $region7: #{tpu_custom_call.1} parent=0 // loop_footer_branch
    %11 = sbr.rel target = $region3
  $region8: #{tpu_custom_call.1} parent=0 // loop_exit
    _

</llo_original>
